<compile_context>
chip_gen: v7x
topology: tpu7x:2x2x1
jax: 0.10.0
libtpu: 0.0.40
codegen_flags: <defaults>
</compile_context>

<pallas_src>
import random
from functools import partial

import jax
import jax.numpy as jnp
from jax.experimental import pallas as pl
from jax.experimental.pallas import tpu as pltpu

EMB_DIM = 768          # hard-coded in Sam.__init__ (BatchNorm1d(768), Linear(768, ...))
BN_EPS = 1e-5          # nn.BatchNorm1d default eps
LANE = 128
SUBLANE = 8


def _round_up(x, m):
    return ((x + m - 1) // m) * m


def _choose_k_tiling(k):
    """Pick a K-tile size and the padded contraction length."""
    for tk in (512, 384, 256, 128):
        if k % tk == 0:
            return tk, k
    return 256, _round_up(k, 256)


# --------------------------------------------------------------------------- #
# Fused Pallas kernel:
#   encoder last-block matmul (K-grid, f32 accumulator) + tanh
#   + BN1d training-mode batch stats (two-pass centered variance)
#   + bias-free classifier matmul, lane-dense padded output.
# --------------------------------------------------------------------------- #
def _fused_enc_bn_cls_kernel(real_b, x_ref, ew_ref, bn_ref, wt_ref,
                             feat_ref, score_ref, acc_ref):
    # x_ref:     (Bp, tk)    padded input slab (f32), zero rows beyond real_b
    # ew_ref:    (tk, C)     encoder last-block weight slab (bf16, pre-cast at init)
    # bn_ref:    (2, C)      row 0 = gamma, row 1 = beta (f32)
    # wt_ref:    (C, Ppad)   classifier weight, pre-transposed + zero-padded (bf16)
    # feat_ref:  (Bp, C)     tanh(encoder matmul)  == list_out[-1]        (f32)
    # score_ref: (Bp, Ppad)  classifier logits                             (f32)
    # acc_ref:   (Bp, C)     f32 accumulator scratch
    k = pl.program_id(0)

    @pl.when(k == 0)
    def _():
        acc_ref[...] = jnp.zeros_like(acc_ref)

    acc_ref[...] += jnp.dot(
        x_ref[...].astype(jnp.bfloat16),
        ew_ref[...],
        preferred_element_type=jnp.float32,
    )

    @pl.when(k == pl.num_programs(0) - 1)
    def _():
        feat = jnp.tanh(acc_ref[...])                       # [Bp, C] f32
        feat_ref[...] = feat

        # BN training-mode batch statistics over the REAL batch rows only.
        inv_b = jnp.float32(1.0 / real_b)
        row_ids = jax.lax.broadcasted_iota(jnp.int32, feat.shape, 0)
        row_mask = (row_ids < real_b).astype(jnp.float32)   # [Bp, C]
        xm = feat * row_mask
        mean = jnp.sum(xm, axis=0, keepdims=True) * inv_b   # [1, C]
        centered = (feat - mean) * row_mask
        var = jnp.sum(centered * centered, axis=0, keepdims=True) * inv_b  # biased var

        bn = bn_ref[...]
        gamma = bn[0:1, :]
        beta = bn[1:2, :]
        scale = gamma * jax.lax.rsqrt(var + BN_EPS)          # [1, C]
        shift = beta - mean * scale                          # [1, C]
        y = feat * scale + shift                             # [Bp, C]

        # NN matmul against the pre-transposed [C, Ppad] weight: no in-kernel
        # transpose, bf16 MXU operands, f32 accumulation, lane-dense store.
        score_ref[...] = jnp.dot(
            y.astype(jnp.bfloat16),
            wt_ref[...],
            preferred_element_type=jnp.float32,
        )


def fused_last_block_head(x_pad, enc_w_last_bf16, bn_affine, cls_wt_pad, real_b):
    """x_pad: [Bp, Kpad] f32; enc_w: [Kpad, C] bf16; bn: [2, C]; wt: [C, Ppad] bf16."""
    bp, kpad = x_pad.shape
    c = enc_w_last_bf16.shape[1]
    ppad = cls_wt_pad.shape[1]
    tk, _ = _choose_k_tiling(kpad)
    assert kpad % tk == 0 and bp % SUBLANE == 0 and ppad % LANE == 0

    feat, score = pl.pallas_call(
        partial(_fused_enc_bn_cls_kernel, real_b),
        out_shape=(
            jax.ShapeDtypeStruct((bp, c), jnp.float32),
            jax.ShapeDtypeStruct((bp, ppad), jnp.float32),
        ),
        grid_spec=pltpu.PrefetchScalarGridSpec(
            num_scalar_prefetch=0,
            grid=(kpad // tk,),
            in_specs=[
                pl.BlockSpec((bp, tk), lambda k: (0, k),
                             memory_space=pltpu.MemorySpace.VMEM),
                pl.BlockSpec((tk, c), lambda k: (k, 0),
                             memory_space=pltpu.MemorySpace.VMEM),
                pl.BlockSpec((2, c), lambda k: (0, 0),
                             memory_space=pltpu.MemorySpace.VMEM),
                pl.BlockSpec((c, ppad), lambda k: (0, 0),
                             memory_space=pltpu.MemorySpace.VMEM),
            ],
            out_specs=[
                pl.BlockSpec((bp, c), lambda k: (0, 0),
                             memory_space=pltpu.MemorySpace.VMEM),
                pl.BlockSpec((bp, ppad), lambda k: (0, 0),
                             memory_space=pltpu.MemorySpace.VMEM),
            ],
            scratch_shapes=[pltpu.VMEM((bp, c), jnp.float32)],
        ),
        compiler_params=pltpu.CompilerParams(
            dimension_semantics=("arbitrary",),
        ),
    )(x_pad, enc_w_last_bf16, bn_affine, cls_wt_pad)
    return feat, score


# --------------------------------------------------------------------------- #
# Deterministic parameter init (mirrors the shapes declared in Sam.__init__).
# All per-call weight prep (bf16 cast, padding, transpose) is hoisted here.
# --------------------------------------------------------------------------- #
def init_sam_params(key, cfg):
    L = cfg["num_encoder_blocks"]
    hw = cfg["emb_hw"]
    pdim = cfg["prompt_dim"]
    H, W = cfg["size_train"]
    in_flat = 3 * H * W
    ks = jax.random.split(key, 6)

    # classifiers: per block, per dataset, Linear(768, num_pids, bias=False),
    # weights_init_classifier -> normal(std=0.001)
    cls_w = [
        0.001 * jax.random.normal(jax.random.fold_in(ks[0], d), (L, p, EMB_DIM), jnp.float32)
        for d, p in enumerate(cfg["num_pids"])
    ]

    # BatchNorm1d(768) bottlenecks, kaiming init -> weight=1, bias=0; merged [gamma; beta]
    bn_affine = jnp.stack(
        [jnp.ones((L, EMB_DIM), jnp.float32), jnp.zeros((L, EMB_DIM), jnp.float32)], axis=1
    )  # [L, 2, C]

    # TODO(synk): ImageEncoderViT definition not provided; deterministic linear stand-in.
    enc_w = 0.02 * jax.random.normal(ks[1], (L, in_flat, EMB_DIM), jnp.float32)

    # Hoisted kernel-side constants (bf16, padded, pre-transposed) — done ONCE here.
    _, kpad = _choose_k_tiling(in_flat)
    enc_w_last_bf16 = jnp.pad(
        enc_w[-1], ((0, kpad - in_flat), (0, 0))
    ).astype(jnp.bfloat16)                                              # [Kpad, C]

    cls_wt_last = []
    for d, p in enumerate(cfg["num_pids"]):
        ppad = max(LANE, _round_up(p, LANE))
        w_last = cls_w[d][-1]                                           # [P, C]
        wt = jnp.transpose(
            jnp.pad(w_last, ((0, ppad - p), (0, 0)))
        ).astype(jnp.bfloat16)                                          # [C, Ppad]
        cls_wt_last.append(wt)

    params = {
        # registered buffers (declared in __init__, unused by this forward path)
        "pixel_mean": jnp.asarray([123.675, 116.28, 103.53], jnp.float32).reshape(-1, 1, 1),
        "pixel_std": jnp.asarray([58.395, 57.12, 57.375], jnp.float32).reshape(-1, 1, 1),
        "bn_affine": bn_affine,
        "cls_w": cls_w,
        "cls_wt_last": cls_wt_last,
        "enc_w": enc_w,
        "enc_w_last_bf16": enc_w_last_bf16,
        "img_emb_w": 0.02 * jax.random.normal(ks[2], (in_flat, pdim * hw * hw), jnp.float32),
        # TODO(synk): PromptEncoder definition not provided; deterministic stand-in params.
        "pt_w": 0.02 * jax.random.normal(ks[3], (2, pdim), jnp.float32),
        "no_mask_embed": 0.02 * jax.random.normal(ks[4], (pdim,), jnp.float32),
        "dense_pe": 0.02 * jax.random.normal(ks[5], (1, pdim, hw, hw), jnp.float32),
        # TODO(synk): MaskDecoder definition not provided; deterministic stand-in params.
        "dec_w": 0.02 * jax.random.normal(jax.random.fold_in(ks[5], 7), (pdim, pdim), jnp.float32),
    }
    return params


# --------------------------------------------------------------------------- #
# Stand-ins for the SAM sub-modules whose code was not provided
# --------------------------------------------------------------------------- #
def prompt_encoder_stub(params, points, boxes, B, cfg):
    hw, pdim = cfg["emb_hw"], cfg["prompt_dim"]
    if points is not None:
        coords, labels = points                              # [B,1,2], [B,1]
        sparse = jnp.tanh(coords @ params["pt_w"]) + labels[..., None].astype(jnp.float32)
    else:
        sparse = jnp.zeros((B, 1, pdim), jnp.float32)
    if boxes is not None:
        box_emb = jnp.tanh(boxes.reshape(B, -1, 2) @ params["pt_w"])
        sparse = jnp.concatenate([sparse, box_emb], axis=1)
    dense = jnp.broadcast_to(params["no_mask_embed"][None, :, None, None], (B, pdim, hw, hw))
    return sparse, dense


def mask_decoder_stub(params, image_embeddings, image_pe, sparse_emb, dense_emb):
    src = image_embeddings + dense_emb + image_pe            # [B, 256, hw, hw]
    pooled = jnp.mean(src, axis=(2, 3))                      # [B, 256]
    tok = pooled + jnp.mean(sparse_emb, axis=1)              # [B, 256]
    return jnp.tanh(tok @ params["dec_w"])                   # cls_token [B, 256]


# --------------------------------------------------------------------------- #
# Sam.forward
# --------------------------------------------------------------------------- #
def sam_forward(params, cfg, batched_input, data_name, masks=None, training=True):
    B = batched_input.shape[0]
    L = cfg["num_encoder_blocks"]
    hw, pdim = cfg["emb_hw"], cfg["prompt_dim"]

    x_flat = batched_input.reshape(B, -1).astype(jnp.float32)

    # Blocks 0..L-2 + image embeddings: plain-JAX stand-ins (only their feats are used).
    list_out = [jnp.tanh(x_flat @ params["enc_w"][i]) for i in range(L - 1)]
    image_embeddings = jnp.tanh(x_flat @ params["img_emb_w"]).reshape(B, pdim, hw, hw)

    # Last block + BN bottleneck + classifier: single fused Pallas kernel.
    enc_w_last = params["enc_w_last_bf16"]                   # [Kpad, C] bf16 (pre-cast)
    kpad = enc_w_last.shape[0]
    bp = max(SUBLANE, _round_up(B, SUBLANE))
    x_pad = jnp.pad(x_flat, ((0, bp - B), (0, kpad - x_flat.shape[1])))
    feat_pad, score_pad = fused_last_block_head(
        x_pad, enc_w_last, params["bn_affine"][-1],
        params["cls_wt_last"][data_name], real_b=B)
    last_feat = feat_pad[:B]                                 # list_out[-1]
    list_out.append(last_feat)
    encoder_feat = last_feat[..., None, None]                # [B, 768, 1, 1]

    output, output_rbs = None, None
    if training:
        global_feat = last_feat
        P = params["cls_w"][data_name].shape[1]
        # Reference loop overwrites `cls_scores` each iteration, so only the LAST
        # block's BN bottleneck + classifier output survives — that is exactly
        # what the fused kernel produced above.
        cls_scores = score_pad[:B, :P]                       # [B, P]
        # Mirror the reference's indexing verbatim: cls_scores[-1] / cls_scores[n]
        # slice its leading (batch) dim.
        output = {"feat": global_feat, "score": cls_scores[-1]}
        rng = random.Random(0)                               # seeded for determinism
        random_block_idx = rng.sample(range(L - 1), cfg["hint_num_blocks"])
        output_rbs = [{"feat": list_out[n], "score": cls_scores[n]} for n in random_block_idx]

    # prompts (exact arithmetic of the reference)
    if cfg["point_prompt"]:
        points_coords = jnp.asarray(
            [cfg["size_train"][1] // 2, cfg["size_train"][0] // 2], jnp.float32
        )[None, None, :]
        labels_coords = jnp.asarray([1], jnp.int32)[None, :]
        points = (jnp.repeat(points_coords, B, axis=0), jnp.repeat(labels_coords, B, axis=0))
    else:
        points = None
    if cfg["box_prompt"]:
        boxes = jnp.asarray(
            [[0, 0, cfg["size_train"][1] // 2, cfg["size_train"][0] // 2]], jnp.float32
        )[None, :, :]
        boxes = jnp.repeat(boxes, B, axis=0)
    else:
        boxes = None

    sparse_embeddings, dense_embeddings = prompt_encoder_stub(params, points, boxes, B, cfg)
    cls_token = mask_decoder_stub(
        params, image_embeddings, params["dense_pe"], sparse_embeddings, dense_embeddings
    )

    if training:
        return cls_token, encoder_feat, output, output_rbs
    return cls_token, encoder_feat, None, None


# --------------------------------------------------------------------------- #
if __name__ == "__main__":
    cfg = dict(
        num_encoder_blocks=4,      # len(image_encoder.blocks)
        num_pids=(8, 16),          # cfg.DATASETS.NUM_PIDS
        hint_num_blocks=2,         # cfg.MODEL.LOSSES.HINT.NUM_BLOCKS
        size_train=(32, 32),       # cfg.INPUT.SIZE_TRAIN (H, W)
        point_prompt=True,         # cfg.MODEL.BACKBONE.POINT_PROMPT
        box_prompt=False,          # cfg.MODEL.BACKBONE.BOX_PROMPT
        prompt_dim=256,
        emb_hw=4,
    )

    key = jax.random.PRNGKey(0)
    k_param, k_x = jax.random.split(key)
    params = init_sam_params(k_param, cfg)

    # B=4 keeps the reference's (block-index-into-batch-dim) slicing in range.
    batched_input = jax.random.normal(k_x, (4, 3, 32, 32), dtype=jnp.float32)  # NCHW

    cls_token, encoder_feat, output, output_rbs = sam_forward(
        params, cfg, batched_input, data_name=0, training=True
    )

    jax.block_until_ready(cls_token)
    jax.block_until_ready(encoder_feat)
    jax.block_until_ready(output["feat"])
    jax.block_until_ready(output["score"])
    for o in output_rbs:
        jax.block_until_ready(o["feat"])
        jax.block_until_ready(o["score"])

    print("KERNEL_OK")
</pallas_src>

<mosaic_0001>
module attributes {stable_mosaic.version = 11 : i64} {
  func.func @_fused_enc_bn_cls_kernel(%arg0: i32, %arg1: memref<8x512xf32, #tpu.memory_space<vmem>>, %arg2: memref<512x768xbf16, #tpu.memory_space<vmem>>, %arg3: memref<2x768xf32, #tpu.memory_space<vmem>>, %arg4: memref<768x128xbf16, #tpu.memory_space<vmem>>, %arg5: memref<8x768xf32, #tpu.memory_space<vmem>>, %arg6: memref<8x128xf32, #tpu.memory_space<vmem>>, %arg7: memref<8x768xf32, #tpu.memory_space<vmem>>) attributes {dimension_semantics = [#tpu.dimension_semantics<arbitrary>], iteration_bounds = array<i64: 6>, scalar_prefetch = 0 : i64, scratch_operands = 1 : i64, tpu.core_type = #tpu.core_type<tc>, window_params = [{transform_indices = @transform_0, window_bounds = array<i64: 8, 512>}, {transform_indices = @transform_1, window_bounds = array<i64: 512, 768>}, {pipeline_mode = #tpu.pipeline_mode<synchronous>, transform_indices = @transform_2, window_bounds = array<i64: 2, 768>}, {pipeline_mode = #tpu.pipeline_mode<synchronous>, transform_indices = @transform_3, window_bounds = array<i64: 768, 128>}, {pipeline_mode = #tpu.pipeline_mode<synchronous>, transform_indices = @transform_4, window_bounds = array<i64: 8, 768>}, {pipeline_mode = #tpu.pipeline_mode<synchronous>, transform_indices = @transform_5, window_bounds = array<i64: 8, 128>}]} {
    %c0_i32 = arith.constant 0 : i32
    %0 = arith.cmpi eq, %arg0, %c0_i32 : i32
    %1 = arith.extui %0 : i1 to i32
    %c0_i32_0 = arith.constant 0 : i32
    %2 = arith.cmpi ne, %1, %c0_i32_0 : i32
    scf.if %2 {
      %cst_9 = arith.constant 0.000000e+00 : f32
      %13 = vector.broadcast %cst_9 : f32 to vector<8x768xf32>
      %c0_10 = arith.constant 0 : index
      %c0_11 = arith.constant 0 : index
      %14 = vector.load %arg7[%c0_10, %c0_11] : memref<8x768xf32, #tpu.memory_space<vmem>>, vector<8x768xf32>
      tpu.vector_store %arg7[%c0_10, %c0_11], %13 {strides = array<i32>} : memref<8x768xf32, #tpu.memory_space<vmem>>, vector<8x768xf32>,
    } else {
    }
    %c0 = arith.constant 0 : index
    %c0_1 = arith.constant 0 : index
    %3 = vector.load %arg7[%c0, %c0_1] : memref<8x768xf32, #tpu.memory_space<vmem>>, vector<8x768xf32>
    %c0_2 = arith.constant 0 : index
    %c0_3 = arith.constant 0 : index
    %4 = vector.load %arg1[%c0_2, %c0_3] : memref<8x512xf32, #tpu.memory_space<vmem>>, vector<8x512xf32>
    %5 = arith.truncf %4 : vector<8x512xf32> to vector<8x512xbf16>
    %c0_4 = arith.constant 0 : index
    %c0_5 = arith.constant 0 : index
    %6 = vector.load %arg2[%c0_4, %c0_5] : memref<512x768xbf16, #tpu.memory_space<vmem>>, vector<512x768xbf16>
    %cst = arith.constant dense<0.000000e+00> : vector<8x768xf32>
    %7 = tpu.matmul %5, %6, %cst {dimension_numbers = #tpu.dot_dimension_numbers<[1], [0], [0], [1], [0, 0, 1, 1], [], []>} : vector<8x512xbf16>, vector<512x768xbf16>, vector<8x768xf32> -> vector<8x768xf32>
    %8 = arith.addf %3, %7 : vector<8x768xf32>
    %c0_6 = arith.constant 0 : index
    %c0_7 = arith.constant 0 : index
    %9 = vector.load %arg7[%c0_6, %c0_7] : memref<8x768xf32, #tpu.memory_space<vmem>>, vector<8x768xf32>
    tpu.vector_store %arg7[%c0_6, %c0_7], %8 {strides = array<i32>} : memref<8x768xf32, #tpu.memory_space<vmem>>, vector<8x768xf32>,
    %c5_i32 = arith.constant 5 : i32
    %10 = arith.cmpi eq, %arg0, %c5_i32 : i32
    %11 = arith.extui %10 : i1 to i32
    %c0_i32_8 = arith.constant 0 : i32
    %12 = arith.cmpi ne, %11, %c0_i32_8 : i32
    scf.if %12 {
      %c0_9 = arith.constant 0 : index
      %c0_10 = arith.constant 0 : index
      %13 = vector.load %arg7[%c0_9, %c0_10] : memref<8x768xf32, #tpu.memory_space<vmem>>, vector<8x768xf32>
      %14 = math.tanh %13 : vector<8x768xf32>
      %c0_11 = arith.constant 0 : index
      %c0_12 = arith.constant 0 : index
      %15 = vector.load %arg5[%c0_11, %c0_12] : memref<8x768xf32, #tpu.memory_space<vmem>>, vector<8x768xf32>
      tpu.vector_store %arg5[%c0_11, %c0_12], %14 {strides = array<i32>} : memref<8x768xf32, #tpu.memory_space<vmem>>, vector<8x768xf32>,
      %16 = tpu.iota {dimensions = array<i32: 0>} : vector<8x768xi32>
      %c4_i32 = arith.constant 4 : i32
      %17 = vector.broadcast %c4_i32 : i32 to vector<8x768xi32>
      %18 = arith.cmpi slt, %16, %17 : vector<8x768xi32>
      %19 = arith.extui %18 : vector<8x768xi1> to vector<8x768xi32>
      %20 = arith.sitofp %19 : vector<8x768xi32> to vector<8x768xf32>
      %21 = arith.mulf %14, %20 : vector<8x768xf32>
      %cst_13 = arith.constant dense<0.000000e+00> : vector<768xf32>
      %22 = vector.multi_reduction <add>, %21, %cst_13 [0] : vector<8x768xf32> to vector<768xf32>
      %23 = vector.shape_cast %22 : vector<768xf32> to vector<1x768xf32>
      %cst_14 = arith.constant 2.500000e-01 : f32
      %24 = vector.broadcast %cst_14 : f32 to vector<1x768xf32>
      %25 = arith.mulf %23, %24 : vector<1x768xf32>
      %26 = vector.broadcast %25 : vector<1x768xf32> to vector<8x768xf32>
      %27 = arith.subf %14, %26 : vector<8x768xf32>
      %28 = arith.mulf %27, %20 : vector<8x768xf32>
      %29 = arith.mulf %28, %28 : vector<8x768xf32>
      %cst_15 = arith.constant dense<0.000000e+00> : vector<768xf32>
      %30 = vector.multi_reduction <add>, %29, %cst_15 [0] : vector<8x768xf32> to vector<768xf32>
      %31 = vector.shape_cast %30 : vector<768xf32> to vector<1x768xf32>
      %cst_16 = arith.constant 2.500000e-01 : f32
      %32 = vector.broadcast %cst_16 : f32 to vector<1x768xf32>
      %33 = arith.mulf %31, %32 : vector<1x768xf32>
      %c0_17 = arith.constant 0 : index
      %c0_18 = arith.constant 0 : index
      %34 = vector.load %arg3[%c0_17, %c0_18] : memref<2x768xf32, #tpu.memory_space<vmem>>, vector<2x768xf32>
      %35 = vector.extract_strided_slice %34 {offsets = [0, 0], sizes = [1, 768], strides = [1, 1]} : vector<2x768xf32> to vector<1x768xf32>
      %36 = vector.extract_strided_slice %34 {offsets = [1, 0], sizes = [1, 768], strides = [1, 1]} : vector<2x768xf32> to vector<1x768xf32>
      %cst_19 = arith.constant 9.99999974E-6 : f32
      %37 = vector.broadcast %cst_19 : f32 to vector<1x768xf32>
      %38 = arith.addf %33, %37 : vector<1x768xf32>
      %39 = math.rsqrt %38 : vector<1x768xf32>
      %40 = arith.mulf %35, %39 : vector<1x768xf32>
      %41 = arith.mulf %25, %40 : vector<1x768xf32>
      %42 = arith.subf %36, %41 : vector<1x768xf32>
      %43 = vector.broadcast %40 : vector<1x768xf32> to vector<8x768xf32>
      %44 = arith.mulf %14, %43 : vector<8x768xf32>
      %45 = vector.broadcast %42 : vector<1x768xf32> to vector<8x768xf32>
      %46 = arith.addf %44, %45 : vector<8x768xf32>
      %47 = arith.truncf %46 : vector<8x768xf32> to vector<8x768xbf16>
      %c0_20 = arith.constant 0 : index
      %c0_21 = arith.constant 0 : index
      %48 = vector.load %arg4[%c0_20, %c0_21] : memref<768x128xbf16, #tpu.memory_space<vmem>>, vector<768x128xbf16>
      %cst_22 = arith.constant dense<0.000000e+00> : vector<8x128xf32>
      %49 = tpu.matmul %47, %48, %cst_22 {dimension_numbers = #tpu.dot_dimension_numbers<[1], [0], [0], [1], [0, 0, 1, 1], [], []>} : vector<8x768xbf16>, vector<768x128xbf16>, vector<8x128xf32> -> vector<8x128xf32>
      %c0_23 = arith.constant 0 : index
      %c0_24 = arith.constant 0 : index
      %50 = vector.load %arg6[%c0_23, %c0_24] : memref<8x128xf32, #tpu.memory_space<vmem>>, vector<8x128xf32>
      tpu.vector_store %arg6[%c0_23, %c0_24], %49 {strides = array<i32>} : memref<8x128xf32, #tpu.memory_space<vmem>>, vector<8x128xf32>,
    } else {
    }
    return
  }
  func.func @transform_0(%arg0: i32) -> (i32, i32) {
    %c0_i32 = arith.constant 0 : i32
    %c0_i32_0 = arith.constant 0 : i32
    return %c0_i32, %arg0 : i32, i32
  }
  func.func @transform_1(%arg0: i32) -> (i32, i32) {
    %c0_i32 = arith.constant 0 : i32
    %c0_i32_0 = arith.constant 0 : i32
    return %arg0, %c0_i32 : i32, i32
  }
  func.func @transform_2(%arg0: i32) -> (i32, i32) {
    %c0_i32 = arith.constant 0 : i32
    %c0_i32_0 = arith.constant 0 : i32
    %c0_i32_1 = arith.constant 0 : i32
    return %c0_i32, %c0_i32_0 : i32, i32
  }
  func.func @transform_3(%arg0: i32) -> (i32, i32) {
    %c0_i32 = arith.constant 0 : i32
    %c0_i32_0 = arith.constant 0 : i32
    %c0_i32_1 = arith.constant 0 : i32
    return %c0_i32, %c0_i32_0 : i32, i32
  }
  func.func @transform_4(%arg0: i32) -> (i32, i32) {
    %c0_i32 = arith.constant 0 : i32
    %c0_i32_0 = arith.constant 0 : i32
    %c0_i32_1 = arith.constant 0 : i32
    return %c0_i32, %c0_i32_0 : i32, i32
  }
  func.func @transform_5(%arg0: i32) -> (i32, i32) {
    %c0_i32 = arith.constant 0 : i32
    %c0_i32_0 = arith.constant 0 : i32
    %c0_i32_1 = arith.constant 0 : i32
    return %c0_i32, %c0_i32_0 : i32, i32
  }
}

</mosaic_0001>

<llo_original>
// kernel: tpu_custom_call.1
$region0: #{tpu_custom_call.1}
  #allocation0 [shape = 'u32[]', space=smem, size = 0x4, offset = 0x4, fixed_abs, tag = 'smem constant byte address 0x4 - core index']
  #allocation1 [shape = 'u32[144,128]{1,0:T(1,128)}', space=vmem, size = 0x12000, scoped, tag = 'internal scratch']
  #allocation2 [shape = 'f32[8,768]{1,0:T(8,128)}', space=vmem, size = 0x6000, scoped, tag = 'scratch operand']
  %s0 = inlined_call_operand.hbm [shape: f32[8,3072], index: 0, kind: input, shape index: {}]
  %s1 = inlined_call_operand.hbm [shape: bf16[3072,768], index: 1, kind: input, shape index: {}]
  %s2 = inlined_call_operand.hbm [shape: f32[2,768], index: 2, kind: input, shape index: {}]
  %s3 = inlined_call_operand.hbm [shape: bf16[768,128], index: 3, kind: input, shape index: {}]
  %s4 = inlined_call_operand.hbm [shape: f32[8,768], index: 4, kind: output, shape index: {0}]
  %s5 = inlined_call_operand.hbm [shape: f32[8,128], index: 5, kind: output, shape index: {1}]
  %6 = xla_tuple %s4, %s5
  %s7 = sld [smem:[#allocation0]]
  $region81: #{tpu_custom_call.1} parent=0
    _
  %s9 = ssub.s32 1, %s7
  %s10 = scalar_select 0, %s9, %s7
  $region1: #{tpu_custom_call.1} parent=0
    #allocation3 [shape = 'u8[32768]{0}', space=vmem, size = 0x8000, scoped, tag = 'input window, operand 0']
    #allocation4 [shape = 's32[2]{0}', space=sflag, size = 0x8, scoped, tag = 'scoped memory for tpu_custom_call.1']
    #allocation5 [shape = 's32[2]{0}', space=sflag, size = 0x8, scoped, tag = 'scoped memory for tpu_custom_call.1']
    #allocation6 [shape = 'u8[1572864]{0}', space=vmem, size = 0x180000, scoped, tag = 'input window, operand 1']
    #allocation7 [shape = 's32[2]{0}', space=sflag, size = 0x8, scoped, tag = 'scoped memory for tpu_custom_call.1']
    #allocation8 [shape = 'u8[6144]{0}', space=vmem, size = 0x1800, scoped, tag = 'input window, operand 2, single buffered']
    #allocation9 [shape = 'u8[196608]{0}', space=vmem, size = 0x30000, scoped, tag = 'input window, operand 3, single buffered']
    #allocation10 [shape = 's32[1]{0}', space=sflag, size = 0x4, scoped, tag = 'scoped memory for tpu_custom_call.1']
    #allocation11 [shape = 'u8[24576]{0}', space=vmem, size = 0x6000, scoped, tag = 'output window, operand 0, single buffered']
    #allocation12 [shape = 'u8[4096]{0}', space=vmem, size = 0x1000, scoped, tag = 'output window, operand 1, single buffered']
    #allocation13 [shape = 's32[1]{0}', space=sflag, size = 0x4, scoped, tag = 'scoped memory for tpu_custom_call.1']
    %11 = vsyncpa [#allocation4], 0
    %s12 = scalar_lea.sflag [#allocation4], 1
    %13 = vsyncpa %s12, 0
    %14 = vsyncpa [#allocation7], 0
    %s15 = scalar_lea.sflag [#allocation7], 1
    %16 = vsyncpa %s15, 0
    %17 = vsyncpa [#allocation10], 0
    %18 = vsyncpa [#allocation5], 0
    %19 = vsyncpa [#allocation13], 0
    loop: start=0, step=1, limit=8
    $region2: #{tpu_custom_call.1} parent=1 // loop_pre_header
      _
    $region3: #{tpu_custom_call.1} parent=1 // loop_header
      %s21 = sphi 0, %s25
      %p22 = scmp.ge.s32.totalorder %s21, 8
      %s31 = sphi 0, %s33
      %s34 = sphi 0, %s31
      %s35 = sphi 0, %s34
      %s51 = sphi 0, %s35
      %s57 = sphi 0, %s59
      %s60 = sphi 0, %s57
      %s61 = sphi 0, %s60
      %s77 = sphi 0, %s61
      %s81 = sphi 0, %s81
      %s83 = sphi 0, %s81
      %s84 = sphi 0, %s83
      %s98 = sphi 0, %s84
      %s102 = sphi 0, %s102
      %s104 = sphi 0, %s102
      %s105 = sphi 0, %s104
      %s119 = sphi 0, %s105
      %s123 = sphi 0, %s123
      %s125 = sphi 0, %s123
      %s126 = sphi 0, %s125
      %s140 = sphi 0, %s126
      %s144 = sphi 0, %s144
      %s146 = sphi 0, %s144
      %s147 = sphi 0, %s146
      %s161 = sphi 0, %s147
    $region4: #{tpu_custom_call.1} parent=1 // loop_header_branch
      %24 = sbr.rel (%p22) target = $region8
    $region5: #{tpu_custom_call.1} parent=1 // loop_body
      %s26 = ssub.s32 %s21, 1
      %s27 = ssub.s32 %s21, 2
      %s28 = sadd.s32 %s21, 1
      %s29 = ssub.s32 %s21, %s28
      %p30 = scmp.eq.s32.totalorder %s29, 0
      %s32 = sadd.s32 %s31, 1
      %s33 = scalar_select %p30, %s31, %s32
      %p36 = pneg %p30
      %p37 = scmp.eq.s32.totalorder %s21, 5
      %p38 = por %p36, %p37
      %p39 = scmp.ne.s32.totalorder %s31, %s34
      %p40 = scmp.eq.s32.totalorder %s21, 0
      %p41 = por %p39, %p40
      %p42 = scmp.ne.s32.totalorder %s31, %s34
      %p43 = scmp.eq.s32.totalorder %s26, 5
      %p44 = por %p42, %p43
      %p45 = scmp.ne.s32.totalorder %s34, %s35
      %p46 = scmp.eq.s32.totalorder %s26, 0
      %p47 = por %p45, %p46
      %p48 = scmp.ne.s32.totalorder %s34, %s35
      %p49 = scmp.eq.s32.totalorder %s27, 5
      %p50 = por %p48, %p49
      %p52 = scmp.ne.s32.totalorder %s35, %s51
      %p53 = scmp.eq.s32.totalorder %s27, 0
      %p54 = por %p52, %p53
      %s55 = ssub.s32 %s21, %s28
      %p56 = scmp.eq.s32.totalorder %s55, 0
      %s58 = sadd.s32 %s57, 1
      %s59 = scalar_select %p56, %s57, %s58
      %p62 = pneg %p56
      %p63 = scmp.eq.s32.totalorder %s21, 5
      %p64 = por %p62, %p63
      %p65 = scmp.ne.s32.totalorder %s57, %s60
      %p66 = scmp.eq.s32.totalorder %s21, 0
      %p67 = por %p65, %p66
      %p68 = scmp.ne.s32.totalorder %s57, %s60
      %p69 = scmp.eq.s32.totalorder %s26, 5
      %p70 = por %p68, %p69
      %p71 = scmp.ne.s32.totalorder %s60, %s61
      %p72 = scmp.eq.s32.totalorder %s26, 0
      %p73 = por %p71, %p72
      %p74 = scmp.ne.s32.totalorder %s60, %s61
      %p75 = scmp.eq.s32.totalorder %s27, 5
      %p76 = por %p74, %p75
      %p78 = scmp.ne.s32.totalorder %s61, %s77
      %p79 = scmp.eq.s32.totalorder %s27, 0
      %p80 = por %p78, %p79
      %s82 = sadd.s32 %s81, 1
      %p85 = scmp.eq.s32.totalorder %s21, 5
      %p86 = scmp.ne.s32.totalorder %s81, %s83
      %p87 = scmp.eq.s32.totalorder %s21, 0
      %p88 = por %p86, %p87
      %p89 = scmp.ne.s32.totalorder %s81, %s83
      %p90 = scmp.eq.s32.totalorder %s26, 5
      %p91 = por %p89, %p90
      %p92 = scmp.ne.s32.totalorder %s83, %s84
      %p93 = scmp.eq.s32.totalorder %s26, 0
      %p94 = por %p92, %p93
      %p95 = scmp.ne.s32.totalorder %s83, %s84
      %p96 = scmp.eq.s32.totalorder %s27, 5
      %p97 = por %p95, %p96
      %p99 = scmp.ne.s32.totalorder %s84, %s98
      %p100 = scmp.eq.s32.totalorder %s27, 0
      %p101 = por %p99, %p100
      %s103 = sadd.s32 %s102, 1
      %p106 = scmp.eq.s32.totalorder %s21, 5
      %p107 = scmp.ne.s32.totalorder %s102, %s104
      %p108 = scmp.eq.s32.totalorder %s21, 0
      %p109 = por %p107, %p108
      %p110 = scmp.ne.s32.totalorder %s102, %s104
      %p111 = scmp.eq.s32.totalorder %s26, 5
      %p112 = por %p110, %p111
      %p113 = scmp.ne.s32.totalorder %s104, %s105
      %p114 = scmp.eq.s32.totalorder %s26, 0
      %p115 = por %p113, %p114
      %p116 = scmp.ne.s32.totalorder %s104, %s105
      %p117 = scmp.eq.s32.totalorder %s27, 5
      %p118 = por %p116, %p117
      %p120 = scmp.ne.s32.totalorder %s105, %s119
      %p121 = scmp.eq.s32.totalorder %s27, 0
      %p122 = por %p120, %p121
      %s124 = sadd.s32 %s123, 1
      %p127 = scmp.eq.s32.totalorder %s21, 5
      %p128 = scmp.ne.s32.totalorder %s123, %s125
      %p129 = scmp.eq.s32.totalorder %s21, 0
      %p130 = por %p128, %p129
      %p131 = scmp.ne.s32.totalorder %s123, %s125
      %p132 = scmp.eq.s32.totalorder %s26, 5
      %p133 = por %p131, %p132
      %p134 = scmp.ne.s32.totalorder %s125, %s126
      %p135 = scmp.eq.s32.totalorder %s26, 0
      %p136 = por %p134, %p135
      %p137 = scmp.ne.s32.totalorder %s125, %s126
      %p138 = scmp.eq.s32.totalorder %s27, 5
      %p139 = por %p137, %p138
      %p141 = scmp.ne.s32.totalorder %s126, %s140
      %p142 = scmp.eq.s32.totalorder %s27, 0
      %p143 = por %p141, %p142
      %s145 = sadd.s32 %s144, 1
      %p148 = scmp.eq.s32.totalorder %s21, 5
      %p149 = scmp.ne.s32.totalorder %s144, %s146
      %p150 = scmp.eq.s32.totalorder %s21, 0
      %p151 = por %p149, %p150
      %p152 = scmp.ne.s32.totalorder %s144, %s146
      %p153 = scmp.eq.s32.totalorder %s26, 5
      %p154 = por %p152, %p153
      %p155 = scmp.ne.s32.totalorder %s146, %s147
      %p156 = scmp.eq.s32.totalorder %s26, 0
      %p157 = por %p155, %p156
      %p158 = scmp.ne.s32.totalorder %s146, %s147
      %p159 = scmp.eq.s32.totalorder %s27, 5
      %p160 = por %p158, %p159
      %p162 = scmp.ne.s32.totalorder %s147, %s161
      %p163 = scmp.eq.s32.totalorder %s27, 0
      %p164 = por %p162, %p163
      %p165 = scmp.le.s32.totalorder 1, %s21
      %p166 = scmp.lt.s32.totalorder %s21, 7
      %p167 = pnand %p165, %p166
      %p168 = pneg %p167
      // Predicated region
      $region9: #{tpu_custom_call.1} parent=5 // pred_check
        _
      $region10: #{tpu_custom_call.1} parent=5 // pred_check_branch
        %170 = sbr.rel (%p167) target = $region12
      $region11: #{tpu_custom_call.1} parent=5 // pred_region
        %s171 = ssub.s32 %s21, 1
        // Predicated region
        $region13: #{tpu_custom_call.1} parent=11 // pred_check
          %p172 = pneg %p94
        $region14: #{tpu_custom_call.1} parent=11 // pred_check_branch
          %174 = sbr.rel (%p172) target = $region16
        $region15: #{tpu_custom_call.1} parent=11 // pred_region
          %s176 = ssub.s32 192, 192
          %177 = vsyncadd [#allocation7], %s176
          %s179 = sshll.u32 [#allocation8], 4
          %s180 = int_to_ptr.vmem [resolvable:$true] %s179
          %182 = dma.hbm_to_vmem [thread:$0]  %s2, 192, %s180, [#allocation7]
        $region16: #{tpu_custom_call.1} parent=11 // pred_fallthru
          _
        // Predicated region
        $region17: #{tpu_custom_call.1} parent=11 // pred_check
          %p183 = pneg %p115
        $region18: #{tpu_custom_call.1} parent=11 // pred_check_branch
          %185 = sbr.rel (%p183) target = $region20
        $region19: #{tpu_custom_call.1} parent=11 // pred_region
          %s187 = ssub.s32 6144, 6144
          %188 = vsyncadd [#allocation10], %s187
          %s189 = sshll.u32 [#allocation9], 4
          %s190 = int_to_ptr.vmem [resolvable:$true] %s189
          %195 = dma.hbm_to_vmem [thread:$0]  %s3, 6144, %s190, [#allocation10], 64, 64, 4
        $region20: #{tpu_custom_call.1} parent=11 // pred_fallthru
          _
      $region12: #{tpu_custom_call.1} parent=5 // pred_fallthru
        _
      %p196 = scmp.lt.s32.totalorder %s21, 6
      // Predicated region
      $region21: #{tpu_custom_call.1} parent=5 // pred_check
        %p197 = pneg %p196
      $region22: #{tpu_custom_call.1} parent=5 // pred_check_branch
        %199 = sbr.rel (%p197) target = $region24
      $region23: #{tpu_custom_call.1} parent=5 // pred_region
        // Predicated region
        $region25: #{tpu_custom_call.1} parent=23 // pred_check
          %p200 = pneg %p41
        $region26: #{tpu_custom_call.1} parent=23 // pred_check_branch
          %202 = sbr.rel (%p200) target = $region28
        $region27: #{tpu_custom_call.1} parent=23 // pred_region
          %s203 = sand.u32 %s31, 1
          %s204 = scalar_lea.sflag [#allocation4], %s203
          %s205 = sand.u32 %s31, 1
          %s206 = smul.addr %s205, 32
          %s207 = scalar_lea.vmem [#allocation3], %s206
          %s208 = smul.u32 4, %s21
          %s210 = ssub.s32 512, 512
          %211 = vsyncadd %s204, %s210
          %s212 = smul.addr %s208, 128
          %s213 = scalar_lea.hbm %s0, %s212
          %s215 = sshll.u32 %s207, 4
          %s216 = int_to_ptr.vmem [resolvable:$true] %s215
          %218 = dma.hbm_to_vmem [thread:$0]  %s213, 512, %s216, %s204
        $region28: #{tpu_custom_call.1} parent=23 // pred_fallthru
          _
        // Predicated region
        $region29: #{tpu_custom_call.1} parent=23 // pred_check
          %p219 = pneg %p67
        $region30: #{tpu_custom_call.1} parent=23 // pred_check_branch
          %221 = sbr.rel (%p219) target = $region32
        $region31: #{tpu_custom_call.1} parent=23 // pred_region
          %s222 = sand.u32 %s21, 1
          %s223 = scalar_lea.sflag [#allocation7], %s222
          %s224 = sand.u32 %s57, 1
          %s225 = smul.addr %s224, 1536
          %s226 = scalar_lea.vmem [#allocation6], %s225
          %s227 = smul.u32 64, %s21
          %s229 = ssub.s32 24576, 24576
          %230 = vsyncadd %s223, %s229
          %s231 = smul.addr %s227, 6
          %s232 = smul.addr %s231, 64
          %s233 = scalar_lea.hbm %s1, %s232
          %s234 = sshll.u32 %s226, 4
          %s235 = int_to_ptr.vmem [resolvable:$true] %s234
          %240 = dma.hbm_to_vmem [thread:$0]  %s233, 24576, %s235, %s223, 384, 384, 24
        $region32: #{tpu_custom_call.1} parent=23 // pred_fallthru
          _
      $region24: #{tpu_custom_call.1} parent=5 // pred_fallthru
        _
      %p241 = scmp.le.s32.totalorder 1, %s21
      %p242 = scmp.lt.s32.totalorder %s21, 7
      %p243 = pnand %p241, %p242
      %p244 = pneg %p243
      // Predicated region
      $region33: #{tpu_custom_call.1} parent=5 // pred_check
        _
      $region34: #{tpu_custom_call.1} parent=5 // pred_check_branch
        %246 = sbr.rel (%p243) target = $region36
      $region35: #{tpu_custom_call.1} parent=5 // pred_region
        %s247 = ssub.s32 %s21, 1
        %s248 = sand.u32 %s34, 1
        %s249 = scalar_lea.sflag [#allocation4], %s248
        %s250 = sand.u32 %s34, 1
        %s251 = smul.addr %s250, 32
        %s252 = scalar_lea.vmem [#allocation3], %s251
        // Predicated region
        $region37: #{tpu_custom_call.1} parent=35 // pred_check
          %p253 = pneg %p47
        $region38: #{tpu_custom_call.1} parent=35 // pred_check_branch
          %255 = sbr.rel (%p253) target = $region40
        $region39: #{tpu_custom_call.1} parent=35 // pred_region
          %256 = dma.done %s249, 512
        $region40: #{tpu_custom_call.1} parent=35 // pred_fallthru
          _
        %s257 = sand.u32 %s26, 1
        %s258 = scalar_lea.sflag [#allocation7], %s257
        %s259 = sand.u32 %s60, 1
        %s260 = smul.addr %s259, 1536
        %s261 = scalar_lea.vmem [#allocation6], %s260
        // Predicated region
        $region41: #{tpu_custom_call.1} parent=35 // pred_check
          %p262 = pneg %p73
        $region42: #{tpu_custom_call.1} parent=35 // pred_check_branch
          %264 = sbr.rel (%p262) target = $region44
        $region43: #{tpu_custom_call.1} parent=35 // pred_region
          %265 = dma.done %s258, 24576
        $region44: #{tpu_custom_call.1} parent=35 // pred_fallthru
          _
        // Predicated region
        $region45: #{tpu_custom_call.1} parent=35 // pred_check
          %p266 = pneg %p94
        $region46: #{tpu_custom_call.1} parent=35 // pred_check_branch
          %268 = sbr.rel (%p266) target = $region48
        $region47: #{tpu_custom_call.1} parent=35 // pred_region
          %269 = dma.done [#allocation7], 192
        $region48: #{tpu_custom_call.1} parent=35 // pred_fallthru
          _
        // Predicated region
        $region49: #{tpu_custom_call.1} parent=35 // pred_check
          %p270 = pneg %p115
        $region50: #{tpu_custom_call.1} parent=35 // pred_check_branch
          %272 = sbr.rel (%p270) target = $region52
        $region51: #{tpu_custom_call.1} parent=35 // pred_region
          %273 = dma.done [#allocation10], 6144
        $region52: #{tpu_custom_call.1} parent=35 // pred_fallthru
          _
        %s274 = sand.u32 %s34, 1
        %s275 = scalar_lea.sflag [#allocation4], %s274
        %s276 = sand.u32 %s34, 1
        %s277 = smul.addr %s276, 32
        %s278 = scalar_lea.vmem [#allocation3], %s277
        %p279 = pneg %p47
        %p280 = pneg %p44
        %s281 = sand.u32 %s26, 1
        %s282 = scalar_lea.sflag [#allocation7], %s281
        %s283 = sand.u32 %s60, 1
        %s284 = smul.addr %s283, 1536
        %s285 = scalar_lea.vmem [#allocation6], %s284
        %p286 = pneg %p73
        %p287 = pneg %p70
        %p288 = pneg %p94
        %p289 = pneg %p91
        %p290 = pneg %p115
        %p291 = pneg %p112
        %p292 = pneg %p136
        %p293 = pneg %p133
        %p294 = pneg %p157
        %p295 = pneg %p154
        %s296 = smul.u32 4, %s26
        %s297 = smul.u32 64, %s26
        %p299 = scmp.eq.s32.totalorder %s26, 0
        // Predicated region
        $region53: #{tpu_custom_call.1} parent=35 // pred_check
          %p300 = pneg %p299
        $region54: #{tpu_custom_call.1} parent=35 // pred_check_branch
          %302 = sbr.rel (%p300) target = $region56
        $region55: #{tpu_custom_call.1} parent=35 // pred_region
          %303 = vst [vmem:[#allocation2] sm:$0xff] 0.0
          %304 = vst [vmem:[#allocation2 + $0x8] sm:$0xff] 0.0
          %305 = vst [vmem:[#allocation2 + $0x10] sm:$0xff] 0.0
          %306 = vst [vmem:[#allocation2 + $0x18] sm:$0xff] 0.0
          %307 = vst [vmem:[#allocation2 + $0x20] sm:$0xff] 0.0
          %308 = vst [vmem:[#allocation2 + $0x28] sm:$0xff] 0.0
        $region56: #{tpu_custom_call.1} parent=35 // pred_fallthru
          _
        %v309 = vld [vmem:[#allocation2] sm:$0xff]
        %v310 = vld [vmem:[#allocation2 + $0x8] sm:$0xff]
        %v311 = vld [vmem:[#allocation2 + $0x10] sm:$0xff]
        %v312 = vld [vmem:[#allocation2 + $0x18] sm:$0xff]
        %v313 = vld [vmem:[#allocation2 + $0x20] sm:$0xff]
        %v314 = vld [vmem:[#allocation2 + $0x28] sm:$0xff]
        %v315 = vld [vmem:[%s252] sm:$0xff]
        %v316 = vld [vmem:[%s252 + $0x8] sm:$0xff]
        %v317 = vld [vmem:[%s252 + $0x10] sm:$0xff]
        %v318 = vld [vmem:[%s252 + $0x18] sm:$0xff]
        %v319 = vpack.c.bf16 %v315, %v315
        %v320 = vpack.c.bf16 %v316, %v316
        %v321 = vpack.c.bf16 %v317, %v317
        %v322 = vpack.c.bf16 %v318, %v318
        %v323 = vld [vmem:[%s261] sm:$0xff]
        %v324 = vld [vmem:[%s261 + $0x8] sm:$0xff]
        %v325 = vld [vmem:[%s261 + $0x10] sm:$0xff]
        %v326 = vld [vmem:[%s261 + $0x18] sm:$0xff]
        %v327 = vld [vmem:[%s261 + $0x20] sm:$0xff]
        %v328 = vld [vmem:[%s261 + $0x28] sm:$0xff]
        %v329 = vld [vmem:[%s261 + $0x30] sm:$0xff]
        %v330 = vld [vmem:[%s261 + $0x38] sm:$0xff]
        %v331 = vld [vmem:[%s261 + $0x40] sm:$0xff]
        %v332 = vld [vmem:[%s261 + $0x48] sm:$0xff]
        %v333 = vld [vmem:[%s261 + $0x50] sm:$0xff]
        %v334 = vld [vmem:[%s261 + $0x58] sm:$0xff]
        %v335 = vld [vmem:[%s261 + $0x60] sm:$0xff]
        %v336 = vld [vmem:[%s261 + $0x68] sm:$0xff]
        %v337 = vld [vmem:[%s261 + $0x70] sm:$0xff]
        %v338 = vld [vmem:[%s261 + $0x78] sm:$0xff]
        %v339 = vld [vmem:[%s261 + $0x80] sm:$0xff]
        %v340 = vld [vmem:[%s261 + $0x88] sm:$0xff]
        %v341 = vld [vmem:[%s261 + $0x90] sm:$0xff]
        %v342 = vld [vmem:[%s261 + $0x98] sm:$0xff]
        %v343 = vld [vmem:[%s261 + $0xa0] sm:$0xff]
        %v344 = vld [vmem:[%s261 + $0xa8] sm:$0xff]
        %v345 = vld [vmem:[%s261 + $0xb0] sm:$0xff]
        %v346 = vld [vmem:[%s261 + $0xb8] sm:$0xff]
        %v347 = vld [vmem:[%s261 + $0xc0] sm:$0xff]
        %v348 = vld [vmem:[%s261 + $0xc8] sm:$0xff]
        %v349 = vld [vmem:[%s261 + $0xd0] sm:$0xff]
        %v350 = vld [vmem:[%s261 + $0xd8] sm:$0xff]
        %v351 = vld [vmem:[%s261 + $0xe0] sm:$0xff]
        %v352 = vld [vmem:[%s261 + $0xe8] sm:$0xff]
        %v353 = vld [vmem:[%s261 + $0xf0] sm:$0xff]
        %v354 = vld [vmem:[%s261 + $0xf8] sm:$0xff]
        %v355 = vld [vmem:[%s261 + $0x100] sm:$0xff]
        %v356 = vld [vmem:[%s261 + $0x108] sm:$0xff]
        %v357 = vld [vmem:[%s261 + $0x110] sm:$0xff]
        %v358 = vld [vmem:[%s261 + $0x118] sm:$0xff]
        %v359 = vld [vmem:[%s261 + $0x120] sm:$0xff]
        %v360 = vld [vmem:[%s261 + $0x128] sm:$0xff]
        %v361 = vld [vmem:[%s261 + $0x130] sm:$0xff]
        %v362 = vld [vmem:[%s261 + $0x138] sm:$0xff]
        %v363 = vld [vmem:[%s261 + $0x140] sm:$0xff]
        %v364 = vld [vmem:[%s261 + $0x148] sm:$0xff]
        %v365 = vld [vmem:[%s261 + $0x150] sm:$0xff]
        %v366 = vld [vmem:[%s261 + $0x158] sm:$0xff]
        %v367 = vld [vmem:[%s261 + $0x160] sm:$0xff]
        %v368 = vld [vmem:[%s261 + $0x168] sm:$0xff]
        %v369 = vld [vmem:[%s261 + $0x170] sm:$0xff]
        %v370 = vld [vmem:[%s261 + $0x178] sm:$0xff]
        %v371 = vld [vmem:[%s261 + $0x180] sm:$0xff]
        %v372 = vld [vmem:[%s261 + $0x188] sm:$0xff]
        %v373 = vld [vmem:[%s261 + $0x190] sm:$0xff]
        %v374 = vld [vmem:[%s261 + $0x198] sm:$0xff]
        %v375 = vld [vmem:[%s261 + $0x1a0] sm:$0xff]
        %v376 = vld [vmem:[%s261 + $0x1a8] sm:$0xff]
        %v377 = vld [vmem:[%s261 + $0x1b0] sm:$0xff]
        %v378 = vld [vmem:[%s261 + $0x1b8] sm:$0xff]
        %v379 = vld [vmem:[%s261 + $0x1c0] sm:$0xff]
        %v380 = vld [vmem:[%s261 + $0x1c8] sm:$0xff]
        %v381 = vld [vmem:[%s261 + $0x1d0] sm:$0xff]
        %v382 = vld [vmem:[%s261 + $0x1d8] sm:$0xff]
        %v383 = vld [vmem:[%s261 + $0x1e0] sm:$0xff]
        %v384 = vld [vmem:[%s261 + $0x1e8] sm:$0xff]
        %v385 = vld [vmem:[%s261 + $0x1f0] sm:$0xff]
        %v386 = vld [vmem:[%s261 + $0x1f8] sm:$0xff]
        %v387 = vld [vmem:[%s261 + $0x200] sm:$0xff]
        %v388 = vld [vmem:[%s261 + $0x208] sm:$0xff]
        %v389 = vld [vmem:[%s261 + $0x210] sm:$0xff]
        %v390 = vld [vmem:[%s261 + $0x218] sm:$0xff]
        %v391 = vld [vmem:[%s261 + $0x220] sm:$0xff]
        %v392 = vld [vmem:[%s261 + $0x228] sm:$0xff]
        %v393 = vld [vmem:[%s261 + $0x230] sm:$0xff]
        %v394 = vld [vmem:[%s261 + $0x238] sm:$0xff]
        %v395 = vld [vmem:[%s261 + $0x240] sm:$0xff]
        %v396 = vld [vmem:[%s261 + $0x248] sm:$0xff]
        %v397 = vld [vmem:[%s261 + $0x250] sm:$0xff]
        %v398 = vld [vmem:[%s261 + $0x258] sm:$0xff]
        %v399 = vld [vmem:[%s261 + $0x260] sm:$0xff]
        %v400 = vld [vmem:[%s261 + $0x268] sm:$0xff]
        %v401 = vld [vmem:[%s261 + $0x270] sm:$0xff]
        %v402 = vld [vmem:[%s261 + $0x278] sm:$0xff]
        %v403 = vld [vmem:[%s261 + $0x280] sm:$0xff]
        %v404 = vld [vmem:[%s261 + $0x288] sm:$0xff]
        %v405 = vld [vmem:[%s261 + $0x290] sm:$0xff]
        %v406 = vld [vmem:[%s261 + $0x298] sm:$0xff]
        %v407 = vld [vmem:[%s261 + $0x2a0] sm:$0xff]
        %v408 = vld [vmem:[%s261 + $0x2a8] sm:$0xff]
        %v409 = vld [vmem:[%s261 + $0x2b0] sm:$0xff]
        %v410 = vld [vmem:[%s261 + $0x2b8] sm:$0xff]
        %v411 = vld [vmem:[%s261 + $0x2c0] sm:$0xff]
        %v412 = vld [vmem:[%s261 + $0x2c8] sm:$0xff]
        %v413 = vld [vmem:[%s261 + $0x2d0] sm:$0xff]
        %v414 = vld [vmem:[%s261 + $0x2d8] sm:$0xff]
        %v415 = vld [vmem:[%s261 + $0x2e0] sm:$0xff]
        %v416 = vld [vmem:[%s261 + $0x2e8] sm:$0xff]
        %v417 = vld [vmem:[%s261 + $0x2f0] sm:$0xff]
        %v418 = vld [vmem:[%s261 + $0x2f8] sm:$0xff]
        %v419 = vld [vmem:[%s261 + $0x300] sm:$0xff]
        %v420 = vld [vmem:[%s261 + $0x308] sm:$0xff]
        %v421 = vld [vmem:[%s261 + $0x310] sm:$0xff]
        %v422 = vld [vmem:[%s261 + $0x318] sm:$0xff]
        %v423 = vld [vmem:[%s261 + $0x320] sm:$0xff]
        %v424 = vld [vmem:[%s261 + $0x328] sm:$0xff]
        %v425 = vld [vmem:[%s261 + $0x330] sm:$0xff]
        %v426 = vld [vmem:[%s261 + $0x338] sm:$0xff]
        %v427 = vld [vmem:[%s261 + $0x340] sm:$0xff]
        %v428 = vld [vmem:[%s261 + $0x348] sm:$0xff]
        %v429 = vld [vmem:[%s261 + $0x350] sm:$0xff]
        %v430 = vld [vmem:[%s261 + $0x358] sm:$0xff]
        %v431 = vld [vmem:[%s261 + $0x360] sm:$0xff]
        %v432 = vld [vmem:[%s261 + $0x368] sm:$0xff]
        %v433 = vld [vmem:[%s261 + $0x370] sm:$0xff]
        %v434 = vld [vmem:[%s261 + $0x378] sm:$0xff]
        %v435 = vld [vmem:[%s261 + $0x380] sm:$0xff]
        %v436 = vld [vmem:[%s261 + $0x388] sm:$0xff]
        %v437 = vld [vmem:[%s261 + $0x390] sm:$0xff]
        %v438 = vld [vmem:[%s261 + $0x398] sm:$0xff]
        %v439 = vld [vmem:[%s261 + $0x3a0] sm:$0xff]
        %v440 = vld [vmem:[%s261 + $0x3a8] sm:$0xff]
        %v441 = vld [vmem:[%s261 + $0x3b0] sm:$0xff]
        %v442 = vld [vmem:[%s261 + $0x3b8] sm:$0xff]
        %v443 = vld [vmem:[%s261 + $0x3c0] sm:$0xff]
        %v444 = vld [vmem:[%s261 + $0x3c8] sm:$0xff]
        %v445 = vld [vmem:[%s261 + $0x3d0] sm:$0xff]
        %v446 = vld [vmem:[%s261 + $0x3d8] sm:$0xff]
        %v447 = vld [vmem:[%s261 + $0x3e0] sm:$0xff]
        %v448 = vld [vmem:[%s261 + $0x3e8] sm:$0xff]
        %v449 = vld [vmem:[%s261 + $0x3f0] sm:$0xff]
        %v450 = vld [vmem:[%s261 + $0x3f8] sm:$0xff]
        %v451 = vld [vmem:[%s261 + $0x400] sm:$0xff]
        %v452 = vld [vmem:[%s261 + $0x408] sm:$0xff]
        %v453 = vld [vmem:[%s261 + $0x410] sm:$0xff]
        %v454 = vld [vmem:[%s261 + $0x418] sm:$0xff]
        %v455 = vld [vmem:[%s261 + $0x420] sm:$0xff]
        %v456 = vld [vmem:[%s261 + $0x428] sm:$0xff]
        %v457 = vld [vmem:[%s261 + $0x430] sm:$0xff]
        %v458 = vld [vmem:[%s261 + $0x438] sm:$0xff]
        %v459 = vld [vmem:[%s261 + $0x440] sm:$0xff]
        %v460 = vld [vmem:[%s261 + $0x448] sm:$0xff]
        %v461 = vld [vmem:[%s261 + $0x450] sm:$0xff]
        %v462 = vld [vmem:[%s261 + $0x458] sm:$0xff]
        %v463 = vld [vmem:[%s261 + $0x460] sm:$0xff]
        %v464 = vld [vmem:[%s261 + $0x468] sm:$0xff]
        %v465 = vld [vmem:[%s261 + $0x470] sm:$0xff]
        %v466 = vld [vmem:[%s261 + $0x478] sm:$0xff]
        %v467 = vld [vmem:[%s261 + $0x480] sm:$0xff]
        %v468 = vld [vmem:[%s261 + $0x488] sm:$0xff]
        %v469 = vld [vmem:[%s261 + $0x490] sm:$0xff]
        %v470 = vld [vmem:[%s261 + $0x498] sm:$0xff]
        %v471 = vld [vmem:[%s261 + $0x4a0] sm:$0xff]
        %v472 = vld [vmem:[%s261 + $0x4a8] sm:$0xff]
        %v473 = vld [vmem:[%s261 + $0x4b0] sm:$0xff]
        %v474 = vld [vmem:[%s261 + $0x4b8] sm:$0xff]
        %v475 = vld [vmem:[%s261 + $0x4c0] sm:$0xff]
        %v476 = vld [vmem:[%s261 + $0x4c8] sm:$0xff]
        %v477 = vld [vmem:[%s261 + $0x4d0] sm:$0xff]
        %v478 = vld [vmem:[%s261 + $0x4d8] sm:$0xff]
        %v479 = vld [vmem:[%s261 + $0x4e0] sm:$0xff]
        %v480 = vld [vmem:[%s261 + $0x4e8] sm:$0xff]
        %v481 = vld [vmem:[%s261 + $0x4f0] sm:$0xff]
        %v482 = vld [vmem:[%s261 + $0x4f8] sm:$0xff]
        %v483 = vld [vmem:[%s261 + $0x500] sm:$0xff]
        %v484 = vld [vmem:[%s261 + $0x508] sm:$0xff]
        %v485 = vld [vmem:[%s261 + $0x510] sm:$0xff]
        %v486 = vld [vmem:[%s261 + $0x518] sm:$0xff]
        %v487 = vld [vmem:[%s261 + $0x520] sm:$0xff]
        %v488 = vld [vmem:[%s261 + $0x528] sm:$0xff]
        %v489 = vld [vmem:[%s261 + $0x530] sm:$0xff]
        %v490 = vld [vmem:[%s261 + $0x538] sm:$0xff]
        %v491 = vld [vmem:[%s261 + $0x540] sm:$0xff]
        %v492 = vld [vmem:[%s261 + $0x548] sm:$0xff]
        %v493 = vld [vmem:[%s261 + $0x550] sm:$0xff]
        %v494 = vld [vmem:[%s261 + $0x558] sm:$0xff]
        %v495 = vld [vmem:[%s261 + $0x560] sm:$0xff]
        %v496 = vld [vmem:[%s261 + $0x568] sm:$0xff]
        %v497 = vld [vmem:[%s261 + $0x570] sm:$0xff]
        %v498 = vld [vmem:[%s261 + $0x578] sm:$0xff]
        %v499 = vld [vmem:[%s261 + $0x580] sm:$0xff]
        %v500 = vld [vmem:[%s261 + $0x588] sm:$0xff]
        %v501 = vld [vmem:[%s261 + $0x590] sm:$0xff]
        %v502 = vld [vmem:[%s261 + $0x598] sm:$0xff]
        %v503 = vld [vmem:[%s261 + $0x5a0] sm:$0xff]
        %v504 = vld [vmem:[%s261 + $0x5a8] sm:$0xff]
        %v505 = vld [vmem:[%s261 + $0x5b0] sm:$0xff]
        %v506 = vld [vmem:[%s261 + $0x5b8] sm:$0xff]
        %v507 = vld [vmem:[%s261 + $0x5c0] sm:$0xff]
        %v508 = vld [vmem:[%s261 + $0x5c8] sm:$0xff]
        %v509 = vld [vmem:[%s261 + $0x5d0] sm:$0xff]
        %v510 = vld [vmem:[%s261 + $0x5d8] sm:$0xff]
        %v511 = vld [vmem:[%s261 + $0x5e0] sm:$0xff]
        %v512 = vld [vmem:[%s261 + $0x5e8] sm:$0xff]
        %v513 = vld [vmem:[%s261 + $0x5f0] sm:$0xff]
        %v514 = vld [vmem:[%s261 + $0x5f8] sm:$0xff]
        %v707 = vunpack.c.l.b16 %v323
        %v708 = vunpack.c.h.b16 %v323
        %v709 = vunpack.c.l.b16 %v324
        %v710 = vunpack.c.h.b16 %v324
        %v711 = vunpack.c.l.b16 %v325
        %v712 = vunpack.c.h.b16 %v325
        %v713 = vunpack.c.l.b16 %v326
        %v714 = vunpack.c.h.b16 %v326
        %v715 = vunpack.c.l.b16 %v327
        %v716 = vunpack.c.h.b16 %v327
        %v717 = vunpack.c.l.b16 %v328
        %v718 = vunpack.c.h.b16 %v328
        %v719 = vunpack.c.l.b16 %v329
        %v720 = vunpack.c.h.b16 %v329
        %v721 = vunpack.c.l.b16 %v330
        %v722 = vunpack.c.h.b16 %v330
        %v723 = vunpack.c.l.b16 %v331
        %v724 = vunpack.c.h.b16 %v331
        %v725 = vunpack.c.l.b16 %v332
        %v726 = vunpack.c.h.b16 %v332
        %v727 = vunpack.c.l.b16 %v333
        %v728 = vunpack.c.h.b16 %v333
        %v729 = vunpack.c.l.b16 %v334
        %v730 = vunpack.c.h.b16 %v334
        %v731 = vunpack.c.l.b16 %v335
        %v732 = vunpack.c.h.b16 %v335
        %v733 = vunpack.c.l.b16 %v336
        %v734 = vunpack.c.h.b16 %v336
        %v735 = vunpack.c.l.b16 %v337
        %v736 = vunpack.c.h.b16 %v337
        %v737 = vunpack.c.l.b16 %v338
        %v738 = vunpack.c.h.b16 %v338
        %v739 = vunpack.c.l.b16 %v339
        %v740 = vunpack.c.h.b16 %v339
        %v741 = vunpack.c.l.b16 %v340
        %v742 = vunpack.c.h.b16 %v340
        %v743 = vunpack.c.l.b16 %v341
        %v744 = vunpack.c.h.b16 %v341
        %v745 = vunpack.c.l.b16 %v342
        %v746 = vunpack.c.h.b16 %v342
        %v747 = vunpack.c.l.b16 %v343
        %v748 = vunpack.c.h.b16 %v343
        %v749 = vunpack.c.l.b16 %v344
        %v750 = vunpack.c.h.b16 %v344
        %v751 = vunpack.c.l.b16 %v345
        %v752 = vunpack.c.h.b16 %v345
        %v753 = vunpack.c.l.b16 %v346
        %v754 = vunpack.c.h.b16 %v346
        %v755 = vunpack.c.l.b16 %v347
        %v756 = vunpack.c.h.b16 %v347
        %v757 = vunpack.c.l.b16 %v348
        %v758 = vunpack.c.h.b16 %v348
        %v759 = vunpack.c.l.b16 %v349
        %v760 = vunpack.c.h.b16 %v349
        %v761 = vunpack.c.l.b16 %v350
        %v762 = vunpack.c.h.b16 %v350
        %v763 = vunpack.c.l.b16 %v351
        %v764 = vunpack.c.h.b16 %v351
        %v765 = vunpack.c.l.b16 %v352
        %v766 = vunpack.c.h.b16 %v352
        %v767 = vunpack.c.l.b16 %v353
        %v768 = vunpack.c.h.b16 %v353
        %v769 = vunpack.c.l.b16 %v354
        %v770 = vunpack.c.h.b16 %v354
        %v771 = vunpack.c.l.b16 %v355
        %v772 = vunpack.c.h.b16 %v355
        %v773 = vunpack.c.l.b16 %v356
        %v774 = vunpack.c.h.b16 %v356
        %v775 = vunpack.c.l.b16 %v357
        %v776 = vunpack.c.h.b16 %v357
        %v777 = vunpack.c.l.b16 %v358
        %v778 = vunpack.c.h.b16 %v358
        %v779 = vunpack.c.l.b16 %v359
        %v780 = vunpack.c.h.b16 %v359
        %v781 = vunpack.c.l.b16 %v360
        %v782 = vunpack.c.h.b16 %v360
        %v783 = vunpack.c.l.b16 %v361
        %v784 = vunpack.c.h.b16 %v361
        %v785 = vunpack.c.l.b16 %v362
        %v786 = vunpack.c.h.b16 %v362
        %v787 = vunpack.c.l.b16 %v363
        %v788 = vunpack.c.h.b16 %v363
        %v789 = vunpack.c.l.b16 %v364
        %v790 = vunpack.c.h.b16 %v364
        %v791 = vunpack.c.l.b16 %v365
        %v792 = vunpack.c.h.b16 %v365
        %v793 = vunpack.c.l.b16 %v366
        %v794 = vunpack.c.h.b16 %v366
        %v795 = vunpack.c.l.b16 %v367
        %v796 = vunpack.c.h.b16 %v367
        %v797 = vunpack.c.l.b16 %v368
        %v798 = vunpack.c.h.b16 %v368
        %v799 = vunpack.c.l.b16 %v369
        %v800 = vunpack.c.h.b16 %v369
        %v801 = vunpack.c.l.b16 %v370
        %v802 = vunpack.c.h.b16 %v370
        %v803 = vunpack.c.l.b16 %v371
        %v804 = vunpack.c.h.b16 %v371
        %v805 = vunpack.c.l.b16 %v372
        %v806 = vunpack.c.h.b16 %v372
        %v807 = vunpack.c.l.b16 %v373
        %v808 = vunpack.c.h.b16 %v373
        %v809 = vunpack.c.l.b16 %v374
        %v810 = vunpack.c.h.b16 %v374
        %v811 = vunpack.c.l.b16 %v375
        %v812 = vunpack.c.h.b16 %v375
        %v813 = vunpack.c.l.b16 %v376
        %v814 = vunpack.c.h.b16 %v376
        %v815 = vunpack.c.l.b16 %v377
        %v816 = vunpack.c.h.b16 %v377
        %v817 = vunpack.c.l.b16 %v378
        %v818 = vunpack.c.h.b16 %v378
        %v819 = vunpack.c.l.b16 %v379
        %v820 = vunpack.c.h.b16 %v379
        %v821 = vunpack.c.l.b16 %v380
        %v822 = vunpack.c.h.b16 %v380
        %v823 = vunpack.c.l.b16 %v381
        %v824 = vunpack.c.h.b16 %v381
        %v825 = vunpack.c.l.b16 %v382
        %v826 = vunpack.c.h.b16 %v382
        %v827 = vunpack.c.l.b16 %v383
        %v828 = vunpack.c.h.b16 %v383
        %v829 = vunpack.c.l.b16 %v384
        %v830 = vunpack.c.h.b16 %v384
        %v831 = vunpack.c.l.b16 %v385
        %v832 = vunpack.c.h.b16 %v385
        %v833 = vunpack.c.l.b16 %v386
        %v834 = vunpack.c.h.b16 %v386
        %v835 = vunpack.c.l.b16 %v387
        %v836 = vunpack.c.h.b16 %v387
        %v837 = vunpack.c.l.b16 %v388
        %v838 = vunpack.c.h.b16 %v388
        %v839 = vunpack.c.l.b16 %v389
        %v840 = vunpack.c.h.b16 %v389
        %v841 = vunpack.c.l.b16 %v390
        %v842 = vunpack.c.h.b16 %v390
        %v843 = vunpack.c.l.b16 %v391
        %v844 = vunpack.c.h.b16 %v391
        %v845 = vunpack.c.l.b16 %v392
        %v846 = vunpack.c.h.b16 %v392
        %v847 = vunpack.c.l.b16 %v393
        %v848 = vunpack.c.h.b16 %v393
        %v849 = vunpack.c.l.b16 %v394
        %v850 = vunpack.c.h.b16 %v394
        %v851 = vunpack.c.l.b16 %v395
        %v852 = vunpack.c.h.b16 %v395
        %v853 = vunpack.c.l.b16 %v396
        %v854 = vunpack.c.h.b16 %v396
        %v855 = vunpack.c.l.b16 %v397
        %v856 = vunpack.c.h.b16 %v397
        %v857 = vunpack.c.l.b16 %v398
        %v858 = vunpack.c.h.b16 %v398
        %v859 = vunpack.c.l.b16 %v399
        %v860 = vunpack.c.h.b16 %v399
        %v861 = vunpack.c.l.b16 %v400
        %v862 = vunpack.c.h.b16 %v400
        %v863 = vunpack.c.l.b16 %v401
        %v864 = vunpack.c.h.b16 %v401
        %v865 = vunpack.c.l.b16 %v402
        %v866 = vunpack.c.h.b16 %v402
        %v867 = vunpack.c.l.b16 %v403
        %v868 = vunpack.c.h.b16 %v403
        %v869 = vunpack.c.l.b16 %v404
        %v870 = vunpack.c.h.b16 %v404
        %v871 = vunpack.c.l.b16 %v405
        %v872 = vunpack.c.h.b16 %v405
        %v873 = vunpack.c.l.b16 %v406
        %v874 = vunpack.c.h.b16 %v406
        %v875 = vunpack.c.l.b16 %v407
        %v876 = vunpack.c.h.b16 %v407
        %v877 = vunpack.c.l.b16 %v408
        %v878 = vunpack.c.h.b16 %v408
        %v879 = vunpack.c.l.b16 %v409
        %v880 = vunpack.c.h.b16 %v409
        %v881 = vunpack.c.l.b16 %v410
        %v882 = vunpack.c.h.b16 %v410
        %v883 = vunpack.c.l.b16 %v411
        %v884 = vunpack.c.h.b16 %v411
        %v885 = vunpack.c.l.b16 %v412
        %v886 = vunpack.c.h.b16 %v412
        %v887 = vunpack.c.l.b16 %v413
        %v888 = vunpack.c.h.b16 %v413
        %v889 = vunpack.c.l.b16 %v414
        %v890 = vunpack.c.h.b16 %v414
        %v891 = vunpack.c.l.b16 %v415
        %v892 = vunpack.c.h.b16 %v415
        %v893 = vunpack.c.l.b16 %v416
        %v894 = vunpack.c.h.b16 %v416
        %v895 = vunpack.c.l.b16 %v417
        %v896 = vunpack.c.h.b16 %v417
        %v897 = vunpack.c.l.b16 %v418
        %v898 = vunpack.c.h.b16 %v418
        %v899 = vunpack.c.l.b16 %v419
        %v900 = vunpack.c.h.b16 %v419
        %v901 = vunpack.c.l.b16 %v420
        %v902 = vunpack.c.h.b16 %v420
        %v903 = vunpack.c.l.b16 %v421
        %v904 = vunpack.c.h.b16 %v421
        %v905 = vunpack.c.l.b16 %v422
        %v906 = vunpack.c.h.b16 %v422
        %v907 = vunpack.c.l.b16 %v423
        %v908 = vunpack.c.h.b16 %v423
        %v909 = vunpack.c.l.b16 %v424
        %v910 = vunpack.c.h.b16 %v424
        %v911 = vunpack.c.l.b16 %v425
        %v912 = vunpack.c.h.b16 %v425
        %v913 = vunpack.c.l.b16 %v426
        %v914 = vunpack.c.h.b16 %v426
        %v915 = vunpack.c.l.b16 %v427
        %v916 = vunpack.c.h.b16 %v427
        %v917 = vunpack.c.l.b16 %v428
        %v918 = vunpack.c.h.b16 %v428
        %v919 = vunpack.c.l.b16 %v429
        %v920 = vunpack.c.h.b16 %v429
        %v921 = vunpack.c.l.b16 %v430
        %v922 = vunpack.c.h.b16 %v430
        %v923 = vunpack.c.l.b16 %v431
        %v924 = vunpack.c.h.b16 %v431
        %v925 = vunpack.c.l.b16 %v432
        %v926 = vunpack.c.h.b16 %v432
        %v927 = vunpack.c.l.b16 %v433
        %v928 = vunpack.c.h.b16 %v433
        %v929 = vunpack.c.l.b16 %v434
        %v930 = vunpack.c.h.b16 %v434
        %v931 = vunpack.c.l.b16 %v435
        %v932 = vunpack.c.h.b16 %v435
        %v933 = vunpack.c.l.b16 %v436
        %v934 = vunpack.c.h.b16 %v436
        %v935 = vunpack.c.l.b16 %v437
        %v936 = vunpack.c.h.b16 %v437
        %v937 = vunpack.c.l.b16 %v438
        %v938 = vunpack.c.h.b16 %v438
        %v939 = vunpack.c.l.b16 %v439
        %v940 = vunpack.c.h.b16 %v439
        %v941 = vunpack.c.l.b16 %v440
        %v942 = vunpack.c.h.b16 %v440
        %v943 = vunpack.c.l.b16 %v441
        %v944 = vunpack.c.h.b16 %v441
        %v945 = vunpack.c.l.b16 %v442
        %v946 = vunpack.c.h.b16 %v442
        %v947 = vunpack.c.l.b16 %v443
        %v948 = vunpack.c.h.b16 %v443
        %v949 = vunpack.c.l.b16 %v444
        %v950 = vunpack.c.h.b16 %v444
        %v951 = vunpack.c.l.b16 %v445
        %v952 = vunpack.c.h.b16 %v445
        %v953 = vunpack.c.l.b16 %v446
        %v954 = vunpack.c.h.b16 %v446
        %v955 = vunpack.c.l.b16 %v447
        %v956 = vunpack.c.h.b16 %v447
        %v957 = vunpack.c.l.b16 %v448
        %v958 = vunpack.c.h.b16 %v448
        %v959 = vunpack.c.l.b16 %v449
        %v960 = vunpack.c.h.b16 %v449
        %v961 = vunpack.c.l.b16 %v450
        %v962 = vunpack.c.h.b16 %v450
        %v963 = vunpack.c.l.b16 %v451
        %v964 = vunpack.c.h.b16 %v451
        %v965 = vunpack.c.l.b16 %v452
        %v966 = vunpack.c.h.b16 %v452
        %v967 = vunpack.c.l.b16 %v453
        %v968 = vunpack.c.h.b16 %v453
        %v969 = vunpack.c.l.b16 %v454
        %v970 = vunpack.c.h.b16 %v454
        %v971 = vunpack.c.l.b16 %v455
        %v972 = vunpack.c.h.b16 %v455
        %v973 = vunpack.c.l.b16 %v456
        %v974 = vunpack.c.h.b16 %v456
        %v975 = vunpack.c.l.b16 %v457
        %v976 = vunpack.c.h.b16 %v457
        %v977 = vunpack.c.l.b16 %v458
        %v978 = vunpack.c.h.b16 %v458
        %v979 = vunpack.c.l.b16 %v459
        %v980 = vunpack.c.h.b16 %v459
        %v981 = vunpack.c.l.b16 %v460
        %v982 = vunpack.c.h.b16 %v460
        %v983 = vunpack.c.l.b16 %v461
        %v984 = vunpack.c.h.b16 %v461
        %v985 = vunpack.c.l.b16 %v462
        %v986 = vunpack.c.h.b16 %v462
        %v987 = vunpack.c.l.b16 %v463
        %v988 = vunpack.c.h.b16 %v463
        %v989 = vunpack.c.l.b16 %v464
        %v990 = vunpack.c.h.b16 %v464
        %v991 = vunpack.c.l.b16 %v465
        %v992 = vunpack.c.h.b16 %v465
        %v993 = vunpack.c.l.b16 %v466
        %v994 = vunpack.c.h.b16 %v466
        %v995 = vunpack.c.l.b16 %v467
        %v996 = vunpack.c.h.b16 %v467
        %v997 = vunpack.c.l.b16 %v468
        %v998 = vunpack.c.h.b16 %v468
        %v999 = vunpack.c.l.b16 %v469
        %v1000 = vunpack.c.h.b16 %v469
        %v1001 = vunpack.c.l.b16 %v470
        %v1002 = vunpack.c.h.b16 %v470
        %v1003 = vunpack.c.l.b16 %v471
        %v1004 = vunpack.c.h.b16 %v471
        %v1005 = vunpack.c.l.b16 %v472
        %v1006 = vunpack.c.h.b16 %v472
        %v1007 = vunpack.c.l.b16 %v473
        %v1008 = vunpack.c.h.b16 %v473
        %v1009 = vunpack.c.l.b16 %v474
        %v1010 = vunpack.c.h.b16 %v474
        %v1011 = vunpack.c.l.b16 %v475
        %v1012 = vunpack.c.h.b16 %v475
        %v1013 = vunpack.c.l.b16 %v476
        %v1014 = vunpack.c.h.b16 %v476
        %v1015 = vunpack.c.l.b16 %v477
        %v1016 = vunpack.c.h.b16 %v477
        %v1017 = vunpack.c.l.b16 %v478
        %v1018 = vunpack.c.h.b16 %v478
        %v1019 = vunpack.c.l.b16 %v479
        %v1020 = vunpack.c.h.b16 %v479
        %v1021 = vunpack.c.l.b16 %v480
        %v1022 = vunpack.c.h.b16 %v480
        %v1023 = vunpack.c.l.b16 %v481
        %v1024 = vunpack.c.h.b16 %v481
        %v1025 = vunpack.c.l.b16 %v482
        %v1026 = vunpack.c.h.b16 %v482
        %v1027 = vunpack.c.l.b16 %v483
        %v1028 = vunpack.c.h.b16 %v483
        %v1029 = vunpack.c.l.b16 %v484
        %v1030 = vunpack.c.h.b16 %v484
        %v1031 = vunpack.c.l.b16 %v485
        %v1032 = vunpack.c.h.b16 %v485
        %v1033 = vunpack.c.l.b16 %v486
        %v1034 = vunpack.c.h.b16 %v486
        %v1035 = vunpack.c.l.b16 %v487
        %v1036 = vunpack.c.h.b16 %v487
        %v1037 = vunpack.c.l.b16 %v488
        %v1038 = vunpack.c.h.b16 %v488
        %v1039 = vunpack.c.l.b16 %v489
        %v1040 = vunpack.c.h.b16 %v489
        %v1041 = vunpack.c.l.b16 %v490
        %v1042 = vunpack.c.h.b16 %v490
        %v1043 = vunpack.c.l.b16 %v491
        %v1044 = vunpack.c.h.b16 %v491
        %v1045 = vunpack.c.l.b16 %v492
        %v1046 = vunpack.c.h.b16 %v492
        %v1047 = vunpack.c.l.b16 %v493
        %v1048 = vunpack.c.h.b16 %v493
        %v1049 = vunpack.c.l.b16 %v494
        %v1050 = vunpack.c.h.b16 %v494
        %v1051 = vunpack.c.l.b16 %v495
        %v1052 = vunpack.c.h.b16 %v495
        %v1053 = vunpack.c.l.b16 %v496
        %v1054 = vunpack.c.h.b16 %v496
        %v1055 = vunpack.c.l.b16 %v497
        %v1056 = vunpack.c.h.b16 %v497
        %v1057 = vunpack.c.l.b16 %v498
        %v1058 = vunpack.c.h.b16 %v498
        %v1059 = vunpack.c.l.b16 %v499
        %v1060 = vunpack.c.h.b16 %v499
        %v1061 = vunpack.c.l.b16 %v500
        %v1062 = vunpack.c.h.b16 %v500
        %v1063 = vunpack.c.l.b16 %v501
        %v1064 = vunpack.c.h.b16 %v501
        %v1065 = vunpack.c.l.b16 %v502
        %v1066 = vunpack.c.h.b16 %v502
        %v1067 = vunpack.c.l.b16 %v503
        %v1068 = vunpack.c.h.b16 %v503
        %v1069 = vunpack.c.l.b16 %v504
        %v1070 = vunpack.c.h.b16 %v504
        %v1071 = vunpack.c.l.b16 %v505
        %v1072 = vunpack.c.h.b16 %v505
        %v1073 = vunpack.c.l.b16 %v506
        %v1074 = vunpack.c.h.b16 %v506
        %v1075 = vunpack.c.l.b16 %v507
        %v1076 = vunpack.c.h.b16 %v507
        %v1077 = vunpack.c.l.b16 %v508
        %v1078 = vunpack.c.h.b16 %v508
        %v1079 = vunpack.c.l.b16 %v509
        %v1080 = vunpack.c.h.b16 %v509
        %v1081 = vunpack.c.l.b16 %v510
        %v1082 = vunpack.c.h.b16 %v510
        %v1083 = vunpack.c.l.b16 %v511
        %v1084 = vunpack.c.h.b16 %v511
        %v1085 = vunpack.c.l.b16 %v512
        %v1086 = vunpack.c.h.b16 %v512
        %v1087 = vunpack.c.l.b16 %v513
        %v1088 = vunpack.c.h.b16 %v513
        %v1089 = vunpack.c.l.b16 %v514
        %v1090 = vunpack.c.h.b16 %v514
        %v1091 = vpack.c.b16 %v713, %v707
        %v1092 = vpack.c.b16 %v714, %v708
        %v1093 = vpack.c.b16 %v715, %v709
        %v1094 = vpack.c.b16 %v716, %v710
        %v1095 = vpack.c.b16 %v717, %v711
        %v1096 = vpack.c.b16 %v718, %v712
        %v1097 = vpack.c.b16 %v725, %v719
        %v1098 = vpack.c.b16 %v726, %v720
        %v1099 = vpack.c.b16 %v727, %v721
        %v1100 = vpack.c.b16 %v728, %v722
        %v1101 = vpack.c.b16 %v729, %v723
        %v1102 = vpack.c.b16 %v730, %v724
        %v1103 = vpack.c.b16 %v737, %v731
        %v1104 = vpack.c.b16 %v738, %v732
        %v1105 = vpack.c.b16 %v739, %v733
        %v1106 = vpack.c.b16 %v740, %v734
        %v1107 = vpack.c.b16 %v741, %v735
        %v1108 = vpack.c.b16 %v742, %v736
        %v1109 = vpack.c.b16 %v749, %v743
        %v1110 = vpack.c.b16 %v750, %v744
        %v1111 = vpack.c.b16 %v751, %v745
        %v1112 = vpack.c.b16 %v752, %v746
        %v1113 = vpack.c.b16 %v753, %v747
        %v1114 = vpack.c.b16 %v754, %v748
        %v1115 = vpack.c.b16 %v761, %v755
        %v1116 = vpack.c.b16 %v762, %v756
        %v1117 = vpack.c.b16 %v763, %v757
        %v1118 = vpack.c.b16 %v764, %v758
        %v1119 = vpack.c.b16 %v765, %v759
        %v1120 = vpack.c.b16 %v766, %v760
        %v1121 = vpack.c.b16 %v773, %v767
        %v1122 = vpack.c.b16 %v774, %v768
        %v1123 = vpack.c.b16 %v775, %v769
        %v1124 = vpack.c.b16 %v776, %v770
        %v1125 = vpack.c.b16 %v777, %v771
        %v1126 = vpack.c.b16 %v778, %v772
        %v1127 = vpack.c.b16 %v785, %v779
        %v1128 = vpack.c.b16 %v786, %v780
        %v1129 = vpack.c.b16 %v787, %v781
        %v1130 = vpack.c.b16 %v788, %v782
        %v1131 = vpack.c.b16 %v789, %v783
        %v1132 = vpack.c.b16 %v790, %v784
        %v1133 = vpack.c.b16 %v797, %v791
        %v1134 = vpack.c.b16 %v798, %v792
        %v1135 = vpack.c.b16 %v799, %v793
        %v1136 = vpack.c.b16 %v800, %v794
        %v1137 = vpack.c.b16 %v801, %v795
        %v1138 = vpack.c.b16 %v802, %v796
        %v1139 = vpack.c.b16 %v809, %v803
        %v1140 = vpack.c.b16 %v810, %v804
        %v1141 = vpack.c.b16 %v811, %v805
        %v1142 = vpack.c.b16 %v812, %v806
        %v1143 = vpack.c.b16 %v813, %v807
        %v1144 = vpack.c.b16 %v814, %v808
        %v1145 = vpack.c.b16 %v821, %v815
        %v1146 = vpack.c.b16 %v822, %v816
        %v1147 = vpack.c.b16 %v823, %v817
        %v1148 = vpack.c.b16 %v824, %v818
        %v1149 = vpack.c.b16 %v825, %v819
        %v1150 = vpack.c.b16 %v826, %v820
        %v1151 = vpack.c.b16 %v833, %v827
        %v1152 = vpack.c.b16 %v834, %v828
        %v1153 = vpack.c.b16 %v835, %v829
        %v1154 = vpack.c.b16 %v836, %v830
        %v1155 = vpack.c.b16 %v837, %v831
        %v1156 = vpack.c.b16 %v838, %v832
        %v1157 = vpack.c.b16 %v845, %v839
        %v1158 = vpack.c.b16 %v846, %v840
        %v1159 = vpack.c.b16 %v847, %v841
        %v1160 = vpack.c.b16 %v848, %v842
        %v1161 = vpack.c.b16 %v849, %v843
        %v1162 = vpack.c.b16 %v850, %v844
        %v1163 = vpack.c.b16 %v857, %v851
        %v1164 = vpack.c.b16 %v858, %v852
        %v1165 = vpack.c.b16 %v859, %v853
        %v1166 = vpack.c.b16 %v860, %v854
        %v1167 = vpack.c.b16 %v861, %v855
        %v1168 = vpack.c.b16 %v862, %v856
        %v1169 = vpack.c.b16 %v869, %v863
        %v1170 = vpack.c.b16 %v870, %v864
        %v1171 = vpack.c.b16 %v871, %v865
        %v1172 = vpack.c.b16 %v872, %v866
        %v1173 = vpack.c.b16 %v873, %v867
        %v1174 = vpack.c.b16 %v874, %v868
        %v1175 = vpack.c.b16 %v881, %v875
        %v1176 = vpack.c.b16 %v882, %v876
        %v1177 = vpack.c.b16 %v883, %v877
        %v1178 = vpack.c.b16 %v884, %v878
        %v1179 = vpack.c.b16 %v885, %v879
        %v1180 = vpack.c.b16 %v886, %v880
        %v1181 = vpack.c.b16 %v893, %v887
        %v1182 = vpack.c.b16 %v894, %v888
        %v1183 = vpack.c.b16 %v895, %v889
        %v1184 = vpack.c.b16 %v896, %v890
        %v1185 = vpack.c.b16 %v897, %v891
        %v1186 = vpack.c.b16 %v898, %v892
        %v1187 = vpack.c.b16 %v905, %v899
        %v1188 = vpack.c.b16 %v906, %v900
        %v1189 = vpack.c.b16 %v907, %v901
        %v1190 = vpack.c.b16 %v908, %v902
        %v1191 = vpack.c.b16 %v909, %v903
        %v1192 = vpack.c.b16 %v910, %v904
        %v1193 = vpack.c.b16 %v917, %v911
        %v1194 = vpack.c.b16 %v918, %v912
        %v1195 = vpack.c.b16 %v919, %v913
        %v1196 = vpack.c.b16 %v920, %v914
        %v1197 = vpack.c.b16 %v921, %v915
        %v1198 = vpack.c.b16 %v922, %v916
        %v1199 = vpack.c.b16 %v929, %v923
        %v1200 = vpack.c.b16 %v930, %v924
        %v1201 = vpack.c.b16 %v931, %v925
        %v1202 = vpack.c.b16 %v932, %v926
        %v1203 = vpack.c.b16 %v933, %v927
        %v1204 = vpack.c.b16 %v934, %v928
        %v1205 = vpack.c.b16 %v941, %v935
        %v1206 = vpack.c.b16 %v942, %v936
        %v1207 = vpack.c.b16 %v943, %v937
        %v1208 = vpack.c.b16 %v944, %v938
        %v1209 = vpack.c.b16 %v945, %v939
        %v1210 = vpack.c.b16 %v946, %v940
        %v1211 = vpack.c.b16 %v953, %v947
        %v1212 = vpack.c.b16 %v954, %v948
        %v1213 = vpack.c.b16 %v955, %v949
        %v1214 = vpack.c.b16 %v956, %v950
        %v1215 = vpack.c.b16 %v957, %v951
        %v1216 = vpack.c.b16 %v958, %v952
        %v1217 = vpack.c.b16 %v965, %v959
        %v1218 = vpack.c.b16 %v966, %v960
        %v1219 = vpack.c.b16 %v967, %v961
        %v1220 = vpack.c.b16 %v968, %v962
        %v1221 = vpack.c.b16 %v969, %v963
        %v1222 = vpack.c.b16 %v970, %v964
        %v1223 = vpack.c.b16 %v977, %v971
        %v1224 = vpack.c.b16 %v978, %v972
        %v1225 = vpack.c.b16 %v979, %v973
        %v1226 = vpack.c.b16 %v980, %v974
        %v1227 = vpack.c.b16 %v981, %v975
        %v1228 = vpack.c.b16 %v982, %v976
        %v1229 = vpack.c.b16 %v989, %v983
        %v1230 = vpack.c.b16 %v990, %v984
        %v1231 = vpack.c.b16 %v991, %v985
        %v1232 = vpack.c.b16 %v992, %v986
        %v1233 = vpack.c.b16 %v993, %v987
        %v1234 = vpack.c.b16 %v994, %v988
        %v1235 = vpack.c.b16 %v1001, %v995
        %v1236 = vpack.c.b16 %v1002, %v996
        %v1237 = vpack.c.b16 %v1003, %v997
        %v1238 = vpack.c.b16 %v1004, %v998
        %v1239 = vpack.c.b16 %v1005, %v999
        %v1240 = vpack.c.b16 %v1006, %v1000
        %v1241 = vpack.c.b16 %v1013, %v1007
        %v1242 = vpack.c.b16 %v1014, %v1008
        %v1243 = vpack.c.b16 %v1015, %v1009
        %v1244 = vpack.c.b16 %v1016, %v1010
        %v1245 = vpack.c.b16 %v1017, %v1011
        %v1246 = vpack.c.b16 %v1018, %v1012
        %v1247 = vpack.c.b16 %v1025, %v1019
        %v1248 = vpack.c.b16 %v1026, %v1020
        %v1249 = vpack.c.b16 %v1027, %v1021
        %v1250 = vpack.c.b16 %v1028, %v1022
        %v1251 = vpack.c.b16 %v1029, %v1023
        %v1252 = vpack.c.b16 %v1030, %v1024
        %v1253 = vpack.c.b16 %v1037, %v1031
        %v1254 = vpack.c.b16 %v1038, %v1032
        %v1255 = vpack.c.b16 %v1039, %v1033
        %v1256 = vpack.c.b16 %v1040, %v1034
        %v1257 = vpack.c.b16 %v1041, %v1035
        %v1258 = vpack.c.b16 %v1042, %v1036
        %v1259 = vpack.c.b16 %v1049, %v1043
        %v1260 = vpack.c.b16 %v1050, %v1044
        %v1261 = vpack.c.b16 %v1051, %v1045
        %v1262 = vpack.c.b16 %v1052, %v1046
        %v1263 = vpack.c.b16 %v1053, %v1047
        %v1264 = vpack.c.b16 %v1054, %v1048
        %v1265 = vpack.c.b16 %v1061, %v1055
        %v1266 = vpack.c.b16 %v1062, %v1056
        %v1267 = vpack.c.b16 %v1063, %v1057
        %v1268 = vpack.c.b16 %v1064, %v1058
        %v1269 = vpack.c.b16 %v1065, %v1059
        %v1270 = vpack.c.b16 %v1066, %v1060
        %v1271 = vpack.c.b16 %v1073, %v1067
        %v1272 = vpack.c.b16 %v1074, %v1068
        %v1273 = vpack.c.b16 %v1075, %v1069
        %v1274 = vpack.c.b16 %v1076, %v1070
        %v1275 = vpack.c.b16 %v1077, %v1071
        %v1276 = vpack.c.b16 %v1078, %v1072
        %v1277 = vpack.c.b16 %v1085, %v1079
        %v1278 = vpack.c.b16 %v1086, %v1080
        %v1279 = vpack.c.b16 %v1087, %v1081
        %v1280 = vpack.c.b16 %v1088, %v1082
        %v1281 = vpack.c.b16 %v1089, %v1083
        %v1282 = vpack.c.b16 %v1090, %v1084
        %1475 = vmatprep.subr.bf16.mxu0 %v1092
        %1476 = vmatpush1.bf16.msra.mxu0 %v1091
        %1477 = vmatprep.subr.bf16.mxu0 %v1098
        %1478 = vmatpush1.bf16.msra.mxu0 %v1097
        %1479 = vmatprep.subr.bf16.mxu0 %v1104
        %1480 = vmatpush1.bf16.msra.mxu0 %v1103
        %1481 = vmatprep.subr.bf16.mxu0 %v1110
        %1482 = vmatpush1.bf16.msra.mxu0 %v1109
        %1483 = vmatprep.subr.bf16.mxu0 %v1116
        %1484 = vmatpush1.bf16.msra.mxu0 %v1115
        %1485 = vmatprep.subr.bf16.mxu0 %v1122
        %1486 = vmatpush1.bf16.msra.mxu0 %v1121
        %1487 = vmatprep.subr.bf16.mxu0 %v1128
        %1488 = vmatpush1.bf16.msra.mxu0 %v1127
        %1489 = vmatprep.subr.bf16.mxu0 %v1134
        %1490 = vmatpush1.bf16.msra.mxu0 %v1133
        %1491 = vmatprep.subr.bf16.mxu0 %v1140
        %1492 = vmatpush1.bf16.msra.mxu0 %v1139
        %1493 = vmatprep.subr.bf16.mxu0 %v1146
        %1494 = vmatpush1.bf16.msra.mxu0 %v1145
        %1495 = vmatprep.subr.bf16.mxu0 %v1152
        %1496 = vmatpush1.bf16.msra.mxu0 %v1151
        %1497 = vmatprep.subr.bf16.mxu0 %v1158
        %1498 = vmatpush1.bf16.msra.mxu0 %v1157
        %1499 = vmatprep.subr.bf16.mxu0 %v1164
        %1500 = vmatpush1.bf16.msra.mxu0 %v1163
        %1501 = vmatprep.subr.bf16.mxu0 %v1170
        %1502 = vmatpush1.bf16.msra.mxu0 %v1169
        %1503 = vmatprep.subr.bf16.mxu0 %v1176
        %1504 = vmatpush1.bf16.msra.mxu0 %v1175
        %1505 = vmatprep.subr.bf16.mxu0 %v1182
        %1506 = vmatpush1.bf16.msra.mxu0 %v1181
        %1507 = vmatprep.mubr.bf16.mxu0 %v320
        %1508 = vmatmul.mubr.bf16.gmra.mrb[0].mxu0 %v319
        %v1509 = vpop.f32.mrb[0].mxu0
        %v1510 = vadd.f32 0.0, %v1509
        %v1511 = vpop.f32.mrb[0].mxu0
        %v1512 = vadd.f32 0.0, %v1511
        %v1513 = vpop.f32.mrb[0].mxu0
        %v1514 = vpop.f32.mrb[0].mxu0
        %1515 = vdwg.mxu0
        %1516 = vmatprep.subr.bf16.mxu0 %v1188
        %1517 = vmatpush1.bf16.msra.mxu0 %v1187
        %1518 = vmatprep.subr.bf16.mxu0 %v1194
        %1519 = vmatpush1.bf16.msra.mxu0 %v1193
        %1520 = vmatprep.subr.bf16.mxu0 %v1200
        %1521 = vmatpush1.bf16.msra.mxu0 %v1199
        %1522 = vmatprep.subr.bf16.mxu0 %v1206
        %1523 = vmatpush1.bf16.msra.mxu0 %v1205
        %1524 = vmatprep.subr.bf16.mxu0 %v1212
        %1525 = vmatpush1.bf16.msra.mxu0 %v1211
        %1526 = vmatprep.subr.bf16.mxu0 %v1218
        %1527 = vmatpush1.bf16.msra.mxu0 %v1217
        %1528 = vmatprep.subr.bf16.mxu0 %v1224
        %1529 = vmatpush1.bf16.msra.mxu0 %v1223
        %1530 = vmatprep.subr.bf16.mxu0 %v1230
        %1531 = vmatpush1.bf16.msra.mxu0 %v1229
        %1532 = vmatprep.subr.bf16.mxu0 %v1236
        %1533 = vmatpush1.bf16.msra.mxu0 %v1235
        %1534 = vmatprep.subr.bf16.mxu0 %v1242
        %1535 = vmatpush1.bf16.msra.mxu0 %v1241
        %1536 = vmatprep.subr.bf16.mxu0 %v1248
        %1537 = vmatpush1.bf16.msra.mxu0 %v1247
        %1538 = vmatprep.subr.bf16.mxu0 %v1254
        %1539 = vmatpush1.bf16.msra.mxu0 %v1253
        %1540 = vmatprep.subr.bf16.mxu0 %v1260
        %1541 = vmatpush1.bf16.msra.mxu0 %v1259
        %1542 = vmatprep.subr.bf16.mxu0 %v1266
        %1543 = vmatpush1.bf16.msra.mxu0 %v1265
        %1544 = vmatprep.subr.bf16.mxu0 %v1272
        %1545 = vmatpush1.bf16.msra.mxu0 %v1271
        %1546 = vmatprep.subr.bf16.mxu0 %v1278
        %1547 = vmatpush1.bf16.msra.mxu0 %v1277
        %1548 = vmatprep.mubr.bf16.mxu0 %v322
        %1549 = vmatmul.mubr.bf16.gmra.mrb[0].mxu0 %v321
        %v1550 = vpop.f32.mrb[0].mxu0
        %v1551 = vadd.f32 %v1510, %v1550
        %v1552 = vpop.f32.mrb[0].mxu0
        %v1553 = vadd.f32 %v1512, %v1552
        %v1554 = vpop.f32.mrb[0].mxu0
        %v1555 = vpop.f32.mrb[0].mxu0
        %1556 = vdwg.mxu0
        %1557 = vmatprep.subr.bf16.mxu0 %v1094
        %1558 = vmatpush1.bf16.msra.mxu0 %v1093
        %1559 = vmatprep.subr.bf16.mxu0 %v1100
        %1560 = vmatpush1.bf16.msra.mxu0 %v1099
        %1561 = vmatprep.subr.bf16.mxu0 %v1106
        %1562 = vmatpush1.bf16.msra.mxu0 %v1105
        %1563 = vmatprep.subr.bf16.mxu0 %v1112
        %1564 = vmatpush1.bf16.msra.mxu0 %v1111
        %1565 = vmatprep.subr.bf16.mxu0 %v1118
        %1566 = vmatpush1.bf16.msra.mxu0 %v1117
        %1567 = vmatprep.subr.bf16.mxu0 %v1124
        %1568 = vmatpush1.bf16.msra.mxu0 %v1123
        %1569 = vmatprep.subr.bf16.mxu0 %v1130
        %1570 = vmatpush1.bf16.msra.mxu0 %v1129
        %1571 = vmatprep.subr.bf16.mxu0 %v1136
        %1572 = vmatpush1.bf16.msra.mxu0 %v1135
        %1573 = vmatprep.subr.bf16.mxu0 %v1142
        %1574 = vmatpush1.bf16.msra.mxu0 %v1141
        %1575 = vmatprep.subr.bf16.mxu0 %v1148
        %1576 = vmatpush1.bf16.msra.mxu0 %v1147
        %1577 = vmatprep.subr.bf16.mxu0 %v1154
        %1578 = vmatpush1.bf16.msra.mxu0 %v1153
        %1579 = vmatprep.subr.bf16.mxu0 %v1160
        %1580 = vmatpush1.bf16.msra.mxu0 %v1159
        %1581 = vmatprep.subr.bf16.mxu0 %v1166
        %1582 = vmatpush1.bf16.msra.mxu0 %v1165
        %1583 = vmatprep.subr.bf16.mxu0 %v1172
        %1584 = vmatpush1.bf16.msra.mxu0 %v1171
        %1585 = vmatprep.subr.bf16.mxu0 %v1178
        %1586 = vmatpush1.bf16.msra.mxu0 %v1177
        %1587 = vmatprep.subr.bf16.mxu0 %v1184
        %1588 = vmatpush1.bf16.msra.mxu0 %v1183
        %1589 = vmatprep.mubr.bf16.mxu0 %v320
        %1590 = vmatmul.mubr.bf16.gmra.mrb[0].mxu0 %v319
        %v1591 = vpop.f32.mrb[0].mxu0
        %v1592 = vadd.f32 0.0, %v1591
        %v1593 = vpop.f32.mrb[0].mxu0
        %v1594 = vadd.f32 0.0, %v1593
        %v1595 = vpop.f32.mrb[0].mxu0
        %v1596 = vpop.f32.mrb[0].mxu0
        %1597 = vdwg.mxu0
        %1598 = vmatprep.subr.bf16.mxu0 %v1190
        %1599 = vmatpush1.bf16.msra.mxu0 %v1189
        %1600 = vmatprep.subr.bf16.mxu0 %v1196
        %1601 = vmatpush1.bf16.msra.mxu0 %v1195
        %1602 = vmatprep.subr.bf16.mxu0 %v1202
        %1603 = vmatpush1.bf16.msra.mxu0 %v1201
        %1604 = vmatprep.subr.bf16.mxu0 %v1208
        %1605 = vmatpush1.bf16.msra.mxu0 %v1207
        %1606 = vmatprep.subr.bf16.mxu0 %v1214
        %1607 = vmatpush1.bf16.msra.mxu0 %v1213
        %1608 = vmatprep.subr.bf16.mxu0 %v1220
        %1609 = vmatpush1.bf16.msra.mxu0 %v1219
        %1610 = vmatprep.subr.bf16.mxu0 %v1226
        %1611 = vmatpush1.bf16.msra.mxu0 %v1225
        %1612 = vmatprep.subr.bf16.mxu0 %v1232
        %1613 = vmatpush1.bf16.msra.mxu0 %v1231
        %1614 = vmatprep.subr.bf16.mxu0 %v1238
        %1615 = vmatpush1.bf16.msra.mxu0 %v1237
        %1616 = vmatprep.subr.bf16.mxu0 %v1244
        %1617 = vmatpush1.bf16.msra.mxu0 %v1243
        %1618 = vmatprep.subr.bf16.mxu0 %v1250
        %1619 = vmatpush1.bf16.msra.mxu0 %v1249
        %1620 = vmatprep.subr.bf16.mxu0 %v1256
        %1621 = vmatpush1.bf16.msra.mxu0 %v1255
        %1622 = vmatprep.subr.bf16.mxu0 %v1262
        %1623 = vmatpush1.bf16.msra.mxu0 %v1261
        %1624 = vmatprep.subr.bf16.mxu0 %v1268
        %1625 = vmatpush1.bf16.msra.mxu0 %v1267
        %1626 = vmatprep.subr.bf16.mxu0 %v1274
        %1627 = vmatpush1.bf16.msra.mxu0 %v1273
        %1628 = vmatprep.subr.bf16.mxu0 %v1280
        %1629 = vmatpush1.bf16.msra.mxu0 %v1279
        %1630 = vmatprep.mubr.bf16.mxu0 %v322
        %1631 = vmatmul.mubr.bf16.gmra.mrb[0].mxu0 %v321
        %v1632 = vpop.f32.mrb[0].mxu0
        %v1633 = vadd.f32 %v1592, %v1632
        %v1634 = vpop.f32.mrb[0].mxu0
        %v1635 = vadd.f32 %v1594, %v1634
        %v1636 = vpop.f32.mrb[0].mxu0
        %v1637 = vpop.f32.mrb[0].mxu0
        %1638 = vdwg.mxu0
        %1639 = vmatprep.subr.bf16.mxu0 %v1096
        %1640 = vmatpush1.bf16.msra.mxu0 %v1095
        %1641 = vmatprep.subr.bf16.mxu0 %v1102
        %1642 = vmatpush1.bf16.msra.mxu0 %v1101
        %1643 = vmatprep.subr.bf16.mxu0 %v1108
        %1644 = vmatpush1.bf16.msra.mxu0 %v1107
        %1645 = vmatprep.subr.bf16.mxu0 %v1114
        %1646 = vmatpush1.bf16.msra.mxu0 %v1113
        %1647 = vmatprep.subr.bf16.mxu0 %v1120
        %1648 = vmatpush1.bf16.msra.mxu0 %v1119
        %1649 = vmatprep.subr.bf16.mxu0 %v1126
        %1650 = vmatpush1.bf16.msra.mxu0 %v1125
        %1651 = vmatprep.subr.bf16.mxu0 %v1132
        %1652 = vmatpush1.bf16.msra.mxu0 %v1131
        %1653 = vmatprep.subr.bf16.mxu0 %v1138
        %1654 = vmatpush1.bf16.msra.mxu0 %v1137
        %1655 = vmatprep.subr.bf16.mxu0 %v1144
        %1656 = vmatpush1.bf16.msra.mxu0 %v1143
        %1657 = vmatprep.subr.bf16.mxu0 %v1150
        %1658 = vmatpush1.bf16.msra.mxu0 %v1149
        %1659 = vmatprep.subr.bf16.mxu0 %v1156
        %1660 = vmatpush1.bf16.msra.mxu0 %v1155
        %1661 = vmatprep.subr.bf16.mxu0 %v1162
        %1662 = vmatpush1.bf16.msra.mxu0 %v1161
        %1663 = vmatprep.subr.bf16.mxu0 %v1168
        %1664 = vmatpush1.bf16.msra.mxu0 %v1167
        %1665 = vmatprep.subr.bf16.mxu0 %v1174
        %1666 = vmatpush1.bf16.msra.mxu0 %v1173
        %1667 = vmatprep.subr.bf16.mxu0 %v1180
        %1668 = vmatpush1.bf16.msra.mxu0 %v1179
        %1669 = vmatprep.subr.bf16.mxu0 %v1186
        %1670 = vmatpush1.bf16.msra.mxu0 %v1185
        %1671 = vmatprep.mubr.bf16.mxu0 %v320
        %1672 = vmatmul.mubr.bf16.gmra.mrb[0].mxu0 %v319
        %v1673 = vpop.f32.mrb[0].mxu0
        %v1674 = vadd.f32 0.0, %v1673
        %v1675 = vpop.f32.mrb[0].mxu0
        %v1676 = vadd.f32 0.0, %v1675
        %v1677 = vpop.f32.mrb[0].mxu0
        %v1678 = vpop.f32.mrb[0].mxu0
        %1679 = vdwg.mxu0
        %1680 = vmatprep.subr.bf16.mxu0 %v1192
        %1681 = vmatpush1.bf16.msra.mxu0 %v1191
        %1682 = vmatprep.subr.bf16.mxu0 %v1198
        %1683 = vmatpush1.bf16.msra.mxu0 %v1197
        %1684 = vmatprep.subr.bf16.mxu0 %v1204
        %1685 = vmatpush1.bf16.msra.mxu0 %v1203
        %1686 = vmatprep.subr.bf16.mxu0 %v1210
        %1687 = vmatpush1.bf16.msra.mxu0 %v1209
        %1688 = vmatprep.subr.bf16.mxu0 %v1216
        %1689 = vmatpush1.bf16.msra.mxu0 %v1215
        %1690 = vmatprep.subr.bf16.mxu0 %v1222
        %1691 = vmatpush1.bf16.msra.mxu0 %v1221
        %1692 = vmatprep.subr.bf16.mxu0 %v1228
        %1693 = vmatpush1.bf16.msra.mxu0 %v1227
        %1694 = vmatprep.subr.bf16.mxu0 %v1234
        %1695 = vmatpush1.bf16.msra.mxu0 %v1233
        %1696 = vmatprep.subr.bf16.mxu0 %v1240
        %1697 = vmatpush1.bf16.msra.mxu0 %v1239
        %1698 = vmatprep.subr.bf16.mxu0 %v1246
        %1699 = vmatpush1.bf16.msra.mxu0 %v1245
        %1700 = vmatprep.subr.bf16.mxu0 %v1252
        %1701 = vmatpush1.bf16.msra.mxu0 %v1251
        %1702 = vmatprep.subr.bf16.mxu0 %v1258
        %1703 = vmatpush1.bf16.msra.mxu0 %v1257
        %1704 = vmatprep.subr.bf16.mxu0 %v1264
        %1705 = vmatpush1.bf16.msra.mxu0 %v1263
        %1706 = vmatprep.subr.bf16.mxu0 %v1270
        %1707 = vmatpush1.bf16.msra.mxu0 %v1269
        %1708 = vmatprep.subr.bf16.mxu0 %v1276
        %1709 = vmatpush1.bf16.msra.mxu0 %v1275
        %1710 = vmatprep.subr.bf16.mxu0 %v1282
        %1711 = vmatpush1.bf16.msra.mxu0 %v1281
        %1712 = vmatprep.mubr.bf16.mxu0 %v322
        %1713 = vmatmul.mubr.bf16.gmra.mrb[0].mxu0 %v321
        %v1714 = vpop.f32.mrb[0].mxu0
        %v1715 = vadd.f32 %v1674, %v1714
        %v1716 = vpop.f32.mrb[0].mxu0
        %v1717 = vadd.f32 %v1676, %v1716
        %v1718 = vpop.f32.mrb[0].mxu0
        %v1719 = vpop.f32.mrb[0].mxu0
        %1720 = vdwg.mxu0
        %v1721 = vadd.f32 %v309, %v1551
        %v1722 = vadd.f32 %v310, %v1553
        %v1723 = vadd.f32 %v311, %v1633
        %v1724 = vadd.f32 %v312, %v1635
        %v1725 = vadd.f32 %v313, %v1715
        %v1726 = vadd.f32 %v314, %v1717
        %1727 = vst [vmem:[#allocation2] sm:$0xff] %v1721
        %1728 = vst [vmem:[#allocation2 + $0x8] sm:$0xff] %v1722
        %1729 = vst [vmem:[#allocation2 + $0x10] sm:$0xff] %v1723
        %1730 = vst [vmem:[#allocation2 + $0x18] sm:$0xff] %v1724
        %1731 = vst [vmem:[#allocation2 + $0x20] sm:$0xff] %v1725
        %1732 = vst [vmem:[#allocation2 + $0x28] sm:$0xff] %v1726
        %p1733 = scmp.eq.s32.totalorder %s26, 5
        // Predicated region
        $region57: #{tpu_custom_call.1} parent=35 // pred_check
          %p1734 = pneg %p1733
        $region58: #{tpu_custom_call.1} parent=35 // pred_check_branch
          %1736 = sbr.rel (%p1734) target = $region60
        $region59: #{tpu_custom_call.1} parent=35 // pred_region
          %v1737 = vld [vmem:[#allocation2] sm:$0xff]
          %v1738 = vld [vmem:[#allocation2 + $0x8] sm:$0xff]
          %v1739 = vld [vmem:[#allocation2 + $0x10] sm:$0xff]
          %v1740 = vld [vmem:[#allocation2 + $0x18] sm:$0xff]
          %v1741 = vld [vmem:[#allocation2 + $0x20] sm:$0xff]
          %v1742 = vld [vmem:[#allocation2 + $0x28] sm:$0xff]
          %v1743 = vtanh.pop %v1737
          %v1744 = vtanh.pop %v1738
          %v1745 = vtanh.pop %v1739
          %v1746 = vtanh.pop %v1740
          %v1747 = vtanh.pop %v1741
          %v1748 = vtanh.pop %v1742
          %1749 = vst [vmem:[#allocation11] sm:$0xff] %v1743
          %1750 = vst [vmem:[#allocation11 + $0x8] sm:$0xff] %v1744
          %1751 = vst [vmem:[#allocation11 + $0x10] sm:$0xff] %v1745
          %1752 = vst [vmem:[#allocation11 + $0x18] sm:$0xff] %v1746
          %1753 = vst [vmem:[#allocation11 + $0x20] sm:$0xff] %v1747
          %1754 = vst [vmem:[#allocation11 + $0x28] sm:$0xff] %v1748
          %v1755 = vlaneseq
          %v1756 = vshrl.u32 %v1755, 7
          %vm1757 = vcmp.lt.s32.totalorder %v1756, 4
          %v1758 = vsel %vm1757, 1, 0
          %v1759 = vcvt.s32.f32 %v1758
          %v1760 = vmul.f32 %v1743, %v1759
          %v1761 = vmul.f32 %v1744, %v1759
          %v1762 = vmul.f32 %v1745, %v1759
          %v1763 = vmul.f32 %v1746, %v1759
          %v1764 = vmul.f32 %v1747, %v1759
          %v1765 = vmul.f32 %v1748, %v1759
          %v1766 = vrot.slane %v1760, 4
          %v1767 = vadd.f32 %v1760, %v1766
          %v1768 = vrot.slane %v1767, 2
          %v1769 = vadd.f32 %v1767, %v1768
          %v1770 = vrot.slane %v1769, 1
          %v1771 = vadd.f32 %v1769, %v1770
          %v1772 = vrot.slane %v1761, 4
          %v1773 = vadd.f32 %v1761, %v1772
          %v1774 = vrot.slane %v1773, 2
          %v1775 = vadd.f32 %v1773, %v1774
          %v1776 = vrot.slane %v1775, 1
          %v1777 = vadd.f32 %v1775, %v1776
          %v1778 = vrot.slane %v1762, 4
          %v1779 = vadd.f32 %v1762, %v1778
          %v1780 = vrot.slane %v1779, 2
          %v1781 = vadd.f32 %v1779, %v1780
          %v1782 = vrot.slane %v1781, 1
          %v1783 = vadd.f32 %v1781, %v1782
          %v1784 = vrot.slane %v1763, 4
          %v1785 = vadd.f32 %v1763, %v1784
          %v1786 = vrot.slane %v1785, 2
          %v1787 = vadd.f32 %v1785, %v1786
          %v1788 = vrot.slane %v1787, 1
          %v1789 = vadd.f32 %v1787, %v1788
          %v1790 = vrot.slane %v1764, 4
          %v1791 = vadd.f32 %v1764, %v1790
          %v1792 = vrot.slane %v1791, 2
          %v1793 = vadd.f32 %v1791, %v1792
          %v1794 = vrot.slane %v1793, 1
          %v1795 = vadd.f32 %v1793, %v1794
          %v1796 = vrot.slane %v1765, 4
          %v1797 = vadd.f32 %v1765, %v1796
          %v1798 = vrot.slane %v1797, 2
          %v1799 = vadd.f32 %v1797, %v1798
          %v1800 = vrot.slane %v1799, 1
          %v1801 = vadd.f32 %v1799, %v1800
          %v1802 = vmul.f32 %v1771, 0.25
          %v1803 = vmul.f32 %v1777, 0.25
          %v1804 = vmul.f32 %v1783, 0.25
          %v1805 = vmul.f32 %v1789, 0.25
          %v1806 = vmul.f32 %v1795, 0.25
          %v1807 = vmul.f32 %v1801, 0.25
          %v1808 = vsub.f32 %v1743, %v1802
          %v1809 = vsub.f32 %v1744, %v1803
          %v1810 = vsub.f32 %v1745, %v1804
          %v1811 = vsub.f32 %v1746, %v1805
          %v1812 = vsub.f32 %v1747, %v1806
          %v1813 = vsub.f32 %v1748, %v1807
          %v1814 = vmul.f32 %v1808, %v1759
          %v1815 = vmul.f32 %v1809, %v1759
          %v1816 = vmul.f32 %v1810, %v1759
          %v1817 = vmul.f32 %v1811, %v1759
          %v1818 = vmul.f32 %v1812, %v1759
          %v1819 = vmul.f32 %v1813, %v1759
          %v1820 = vmul.f32 %v1814, %v1814
          %v1821 = vmul.f32 %v1815, %v1815
          %v1822 = vmul.f32 %v1816, %v1816
          %v1823 = vmul.f32 %v1817, %v1817
          %v1824 = vmul.f32 %v1818, %v1818
          %v1825 = vmul.f32 %v1819, %v1819
          %v1826 = vrot.slane %v1820, 4
          %v1827 = vadd.f32 %v1820, %v1826
          %v1828 = vrot.slane %v1827, 2
          %v1829 = vadd.f32 %v1827, %v1828
          %v1830 = vrot.slane %v1829, 1
          %v1831 = vadd.f32 %v1829, %v1830
          %v1832 = vrot.slane %v1821, 4
          %v1833 = vadd.f32 %v1821, %v1832
          %v1834 = vrot.slane %v1833, 2
          %v1835 = vadd.f32 %v1833, %v1834
          %v1836 = vrot.slane %v1835, 1
          %v1837 = vadd.f32 %v1835, %v1836
          %v1838 = vrot.slane %v1822, 4
          %v1839 = vadd.f32 %v1822, %v1838
          %v1840 = vrot.slane %v1839, 2
          %v1841 = vadd.f32 %v1839, %v1840
          %v1842 = vrot.slane %v1841, 1
          %v1843 = vadd.f32 %v1841, %v1842
          %v1844 = vrot.slane %v1823, 4
          %v1845 = vadd.f32 %v1823, %v1844
          %v1846 = vrot.slane %v1845, 2
          %v1847 = vadd.f32 %v1845, %v1846
          %v1848 = vrot.slane %v1847, 1
          %v1849 = vadd.f32 %v1847, %v1848
          %v1850 = vrot.slane %v1824, 4
          %v1851 = vadd.f32 %v1824, %v1850
          %v1852 = vrot.slane %v1851, 2
          %v1853 = vadd.f32 %v1851, %v1852
          %v1854 = vrot.slane %v1853, 1
          %v1855 = vadd.f32 %v1853, %v1854
          %v1856 = vrot.slane %v1825, 4
          %v1857 = vadd.f32 %v1825, %v1856
          %v1858 = vrot.slane %v1857, 2
          %v1859 = vadd.f32 %v1857, %v1858
          %v1860 = vrot.slane %v1859, 1
          %v1861 = vadd.f32 %v1859, %v1860
          %v1862 = vmul.f32 %v1831, 0.25
          %v1863 = vmul.f32 %v1837, 0.25
          %v1864 = vmul.f32 %v1843, 0.25
          %v1865 = vmul.f32 %v1849, 0.25
          %v1866 = vmul.f32 %v1855, 0.25
          %v1867 = vmul.f32 %v1861, 0.25
          %v1868 = vld [vmem:[#allocation8] sm:$0xff]
          %v1869 = vld [vmem:[#allocation8 + $0x8] sm:$0xf]
          %v1870 = vadd.f32 %v1862, 1e-05
          %v1871 = vadd.f32 %v1863, 1e-05
          %v1872 = vadd.f32 %v1864, 1e-05
          %v1873 = vadd.f32 %v1865, 1e-05
          %v1874 = vadd.f32 %v1866, 1e-05
          %v1875 = vadd.f32 %v1867, 1e-05
          %v1876 = vrsqrt.pop %v1870
          %v1877 = vrsqrt.pop %v1871
          %v1878 = vrsqrt.pop %v1872
          %v1879 = vrsqrt.pop %v1873
          %v1880 = vrsqrt.pop %v1874
          %v1881 = vrsqrt.pop %v1875
          %v1888 = vcombine.low %v1876, %v1877
          %v1889 = vcombine.low %v1878, %v1879
          %v1891 = vunpack.c.l.s4 1983009808
          %v1892 = vunpack.c.0.s8 %v1891
          %v1893 = vlaneseq
          %v1894 = vshrl.u32 %v1893, 7
          %v1895 = vsub.s32 %v1892, %v1894
          %v1896 = vrot.slane %v1888, %v1895
          %v1898 = vunpack.c.l.s4 1983009808
          %v1899 = vunpack.c.0.s8 %v1898
          %v1900 = vlaneseq
          %v1901 = vshrl.u32 %v1900, 7
          %v1902 = vsub.s32 %v1899, %v1901
          %v1903 = vrot.slane %v1889, %v1902
          %v1904 = vcombine.low %v1896, %v1903
          %v1905 = vcombine.low %v1880, %v1881
          %v1907 = vunpack.c.l.s4 1983009808
          %v1908 = vunpack.c.0.s8 %v1907
          %v1909 = vlaneseq
          %v1910 = vshrl.u32 %v1909, 7
          %v1911 = vsub.s32 %v1908, %v1910
          %v1912 = vrot.slane %v1905, %v1911
          %v1915 = vmul.f32 %v1868, %v1904
          %v1916 = vmul.f32 %v1869, %v1912
          %v1919 = vlaneseq
          %v1920 = vshrl.u32 %v1919, 7
          %v1921 = vsub.s32 0, %v1920
          %v1922 = vrot.slane %v1915, %v1921
          %v1923 = vlaneseq
          %v1924 = vshrl.u32 %v1923, 7
          %v1925 = vsub.s32 2, %v1924
          %v1926 = vrot.slane %v1915, %v1925
          %v1927 = vlaneseq
          %v1928 = vshrl.u32 %v1927, 7
          %v1929 = vsub.s32 4, %v1928
          %v1930 = vrot.slane %v1915, %v1929
          %v1931 = vlaneseq
          %v1932 = vshrl.u32 %v1931, 7
          %v1933 = vsub.s32 6, %v1932
          %v1934 = vrot.slane %v1915, %v1933
          %v1935 = vlaneseq
          %v1936 = vshrl.u32 %v1935, 7
          %v1937 = vsub.s32 0, %v1936
          %v1938 = vrot.slane %v1916, %v1937
          %v1939 = vlaneseq
          %v1940 = vshrl.u32 %v1939, 7
          %v1941 = vsub.s32 2, %v1940
          %v1942 = vrot.slane %v1916, %v1941
          %v1949 = vmul.f32 %v1802, %v1922
          %v1950 = vmul.f32 %v1803, %v1926
          %v1951 = vmul.f32 %v1804, %v1930
          %v1952 = vmul.f32 %v1805, %v1934
          %v1953 = vmul.f32 %v1806, %v1938
          %v1954 = vmul.f32 %v1807, %v1942
          %v1961 = vcombine.low %v1949, %v1950
          %v1962 = vcombine.low %v1951, %v1952
          %v1964 = vunpack.c.l.s4 1983009808
          %v1965 = vunpack.c.0.s8 %v1964
          %v1966 = vlaneseq
          %v1967 = vshrl.u32 %v1966, 7
          %v1968 = vsub.s32 %v1965, %v1967
          %v1969 = vrot.slane %v1961, %v1968
          %v1971 = vunpack.c.l.s4 1983009808
          %v1972 = vunpack.c.0.s8 %v1971
          %v1973 = vlaneseq
          %v1974 = vshrl.u32 %v1973, 7
          %v1975 = vsub.s32 %v1972, %v1974
          %v1976 = vrot.slane %v1962, %v1975
          %v1977 = vcombine.low %v1969, %v1976
          %v1978 = vcombine.low %v1953, %v1954
          %v1980 = vunpack.c.l.s4 1983009808
          %v1981 = vunpack.c.0.s8 %v1980
          %v1982 = vlaneseq
          %v1983 = vshrl.u32 %v1982, 7
          %v1984 = vsub.s32 %v1981, %v1983
          %v1985 = vrot.slane %v1978, %v1984
          %v1986 = vrot.slane %v1977, 7
          %v1987 = vrot.slane %v1985, 7
          %v1990 = vsub.f32 %v1868, %v1986
          %v1991 = vsub.f32 %v1869, %v1987
          %v1992 = vlaneseq
          %v1993 = vshrl.u32 %v1992, 7
          %v1994 = vsub.s32 0, %v1993
          %v1995 = vrot.slane %v1922, %v1994
          %v1996 = vlaneseq
          %v1997 = vshrl.u32 %v1996, 7
          %v1998 = vsub.s32 0, %v1997
          %v1999 = vrot.slane %v1926, %v1998
          %v2000 = vlaneseq
          %v2001 = vshrl.u32 %v2000, 7
          %v2002 = vsub.s32 0, %v2001
          %v2003 = vrot.slane %v1930, %v2002
          %v2004 = vlaneseq
          %v2005 = vshrl.u32 %v2004, 7
          %v2006 = vsub.s32 0, %v2005
          %v2007 = vrot.slane %v1934, %v2006
          %v2008 = vlaneseq
          %v2009 = vshrl.u32 %v2008, 7
          %v2010 = vsub.s32 0, %v2009
          %v2011 = vrot.slane %v1938, %v2010
          %v2012 = vlaneseq
          %v2013 = vshrl.u32 %v2012, 7
          %v2014 = vsub.s32 0, %v2013
          %v2015 = vrot.slane %v1942, %v2014
          %v2016 = vmul.f32 %v1743, %v1995
          %v2017 = vmul.f32 %v1744, %v1999
          %v2018 = vmul.f32 %v1745, %v2003
          %v2019 = vmul.f32 %v1746, %v2007
          %v2020 = vmul.f32 %v1747, %v2011
          %v2021 = vmul.f32 %v1748, %v2015
          %v2024 = vlaneseq
          %v2025 = vshrl.u32 %v2024, 7
          %v2026 = vsub.s32 1, %v2025
          %v2027 = vrot.slane %v1990, %v2026
          %v2028 = vlaneseq
          %v2029 = vshrl.u32 %v2028, 7
          %v2030 = vsub.s32 3, %v2029
          %v2031 = vrot.slane %v1990, %v2030
          %v2032 = vlaneseq
          %v2033 = vshrl.u32 %v2032, 7
          %v2034 = vsub.s32 5, %v2033
          %v2035 = vrot.slane %v1990, %v2034
          %v2036 = vlaneseq
          %v2037 = vshrl.u32 %v2036, 7
          %v2038 = vsub.s32 7, %v2037
          %v2039 = vrot.slane %v1990, %v2038
          %v2040 = vlaneseq
          %v2041 = vshrl.u32 %v2040, 7
          %v2042 = vsub.s32 1, %v2041
          %v2043 = vrot.slane %v1991, %v2042
          %v2044 = vlaneseq
          %v2045 = vshrl.u32 %v2044, 7
          %v2046 = vsub.s32 3, %v2045
          %v2047 = vrot.slane %v1991, %v2046
          %v2054 = vlaneseq
          %v2055 = vshrl.u32 %v2054, 7
          %v2056 = vsub.s32 1, %v2055
          %v2057 = vrot.slane %v2027, %v2056
          %v2058 = vlaneseq
          %v2059 = vshrl.u32 %v2058, 7
          %v2060 = vsub.s32 1, %v2059
          %v2061 = vrot.slane %v2031, %v2060
          %v2062 = vlaneseq
          %v2063 = vshrl.u32 %v2062, 7
          %v2064 = vsub.s32 1, %v2063
          %v2065 = vrot.slane %v2035, %v2064
          %v2066 = vlaneseq
          %v2067 = vshrl.u32 %v2066, 7
          %v2068 = vsub.s32 1, %v2067
          %v2069 = vrot.slane %v2039, %v2068
          %v2070 = vlaneseq
          %v2071 = vshrl.u32 %v2070, 7
          %v2072 = vsub.s32 1, %v2071
          %v2073 = vrot.slane %v2043, %v2072
          %v2074 = vlaneseq
          %v2075 = vshrl.u32 %v2074, 7
          %v2076 = vsub.s32 1, %v2075
          %v2077 = vrot.slane %v2047, %v2076
          %v2078 = vadd.f32 %v2016, %v2057
          %v2079 = vadd.f32 %v2017, %v2061
          %v2080 = vadd.f32 %v2018, %v2065
          %v2081 = vadd.f32 %v2019, %v2069
          %v2082 = vadd.f32 %v2020, %v2073
          %v2083 = vadd.f32 %v2021, %v2077
          %v2084 = vpack.c.bf16 %v2078, %v2078
          %v2085 = vpack.c.bf16 %v2079, %v2079
          %v2086 = vpack.c.bf16 %v2080, %v2080
          %v2087 = vpack.c.bf16 %v2081, %v2081
          %v2088 = vpack.c.bf16 %v2082, %v2082
          %v2089 = vpack.c.bf16 %v2083, %v2083
          %v2090 = vld [vmem:[#allocation9] sm:$0xf]
          %v2091 = vld [vmem:[#allocation9 + $0x4] sm:$0xf]
          %v2092 = vld [vmem:[#allocation9 + $0x8] sm:$0xf]
          %v2093 = vld [vmem:[#allocation9 + $0xc] sm:$0xf]
          %v2094 = vld [vmem:[#allocation9 + $0x10] sm:$0xf]
          %v2095 = vld [vmem:[#allocation9 + $0x14] sm:$0xf]
          %v2096 = vld [vmem:[#allocation9 + $0x18] sm:$0xf]
          %v2097 = vld [vmem:[#allocation9 + $0x1c] sm:$0xf]
          %v2098 = vld [vmem:[#allocation9 + $0x20] sm:$0xf]
          %v2099 = vld [vmem:[#allocation9 + $0x24] sm:$0xf]
          %v2100 = vld [vmem:[#allocation9 + $0x28] sm:$0xf]
          %v2101 = vld [vmem:[#allocation9 + $0x2c] sm:$0xf]
          %v2102 = vld [vmem:[#allocation9 + $0x30] sm:$0xf]
          %v2103 = vld [vmem:[#allocation9 + $0x34] sm:$0xf]
          %v2104 = vld [vmem:[#allocation9 + $0x38] sm:$0xf]
          %v2105 = vld [vmem:[#allocation9 + $0x3c] sm:$0xf]
          %v2106 = vld [vmem:[#allocation9 + $0x40] sm:$0xf]
          %v2107 = vld [vmem:[#allocation9 + $0x44] sm:$0xf]
          %v2108 = vld [vmem:[#allocation9 + $0x48] sm:$0xf]
          %v2109 = vld [vmem:[#allocation9 + $0x4c] sm:$0xf]
          %v2110 = vld [vmem:[#allocation9 + $0x50] sm:$0xf]
          %v2111 = vld [vmem:[#allocation9 + $0x54] sm:$0xf]
          %v2112 = vld [vmem:[#allocation9 + $0x58] sm:$0xf]
          %v2113 = vld [vmem:[#allocation9 + $0x5c] sm:$0xf]
          %v2114 = vld [vmem:[#allocation9 + $0x60] sm:$0xf]
          %v2115 = vld [vmem:[#allocation9 + $0x64] sm:$0xf]
          %v2116 = vld [vmem:[#allocation9 + $0x68] sm:$0xf]
          %v2117 = vld [vmem:[#allocation9 + $0x6c] sm:$0xf]
          %v2118 = vld [vmem:[#allocation9 + $0x70] sm:$0xf]
          %v2119 = vld [vmem:[#allocation9 + $0x74] sm:$0xf]
          %v2120 = vld [vmem:[#allocation9 + $0x78] sm:$0xf]
          %v2121 = vld [vmem:[#allocation9 + $0x7c] sm:$0xf]
          %v2122 = vld [vmem:[#allocation9 + $0x80] sm:$0xf]
          %v2123 = vld [vmem:[#allocation9 + $0x84] sm:$0xf]
          %v2124 = vld [vmem:[#allocation9 + $0x88] sm:$0xf]
          %v2125 = vld [vmem:[#allocation9 + $0x8c] sm:$0xf]
          %v2126 = vld [vmem:[#allocation9 + $0x90] sm:$0xf]
          %v2127 = vld [vmem:[#allocation9 + $0x94] sm:$0xf]
          %v2128 = vld [vmem:[#allocation9 + $0x98] sm:$0xf]
          %v2129 = vld [vmem:[#allocation9 + $0x9c] sm:$0xf]
          %v2130 = vld [vmem:[#allocation9 + $0xa0] sm:$0xf]
          %v2131 = vld [vmem:[#allocation9 + $0xa4] sm:$0xf]
          %v2132 = vld [vmem:[#allocation9 + $0xa8] sm:$0xf]
          %v2133 = vld [vmem:[#allocation9 + $0xac] sm:$0xf]
          %v2134 = vld [vmem:[#allocation9 + $0xb0] sm:$0xf]
          %v2135 = vld [vmem:[#allocation9 + $0xb4] sm:$0xf]
          %v2136 = vld [vmem:[#allocation9 + $0xb8] sm:$0xf]
          %v2137 = vld [vmem:[#allocation9 + $0xbc] sm:$0xf]
          %v2138 = vld [vmem:[#allocation9 + $0xc0] sm:$0xf]
          %v2139 = vld [vmem:[#allocation9 + $0xc4] sm:$0xf]
          %v2140 = vld [vmem:[#allocation9 + $0xc8] sm:$0xf]
          %v2141 = vld [vmem:[#allocation9 + $0xcc] sm:$0xf]
          %v2142 = vld [vmem:[#allocation9 + $0xd0] sm:$0xf]
          %v2143 = vld [vmem:[#allocation9 + $0xd4] sm:$0xf]
          %v2144 = vld [vmem:[#allocation9 + $0xd8] sm:$0xf]
          %v2145 = vld [vmem:[#allocation9 + $0xdc] sm:$0xf]
          %v2146 = vld [vmem:[#allocation9 + $0xe0] sm:$0xf]
          %v2147 = vld [vmem:[#allocation9 + $0xe4] sm:$0xf]
          %v2148 = vld [vmem:[#allocation9 + $0xe8] sm:$0xf]
          %v2149 = vld [vmem:[#allocation9 + $0xec] sm:$0xf]
          %v2150 = vld [vmem:[#allocation9 + $0xf0] sm:$0xf]
          %v2151 = vld [vmem:[#allocation9 + $0xf4] sm:$0xf]
          %v2152 = vld [vmem:[#allocation9 + $0xf8] sm:$0xf]
          %v2153 = vld [vmem:[#allocation9 + $0xfc] sm:$0xf]
          %v2154 = vld [vmem:[#allocation9 + $0x100] sm:$0xf]
          %v2155 = vld [vmem:[#allocation9 + $0x104] sm:$0xf]
          %v2156 = vld [vmem:[#allocation9 + $0x108] sm:$0xf]
          %v2157 = vld [vmem:[#allocation9 + $0x10c] sm:$0xf]
          %v2158 = vld [vmem:[#allocation9 + $0x110] sm:$0xf]
          %v2159 = vld [vmem:[#allocation9 + $0x114] sm:$0xf]
          %v2160 = vld [vmem:[#allocation9 + $0x118] sm:$0xf]
          %v2161 = vld [vmem:[#allocation9 + $0x11c] sm:$0xf]
          %v2162 = vld [vmem:[#allocation9 + $0x120] sm:$0xf]
          %v2163 = vld [vmem:[#allocation9 + $0x124] sm:$0xf]
          %v2164 = vld [vmem:[#allocation9 + $0x128] sm:$0xf]
          %v2165 = vld [vmem:[#allocation9 + $0x12c] sm:$0xf]
          %v2166 = vld [vmem:[#allocation9 + $0x130] sm:$0xf]
          %v2167 = vld [vmem:[#allocation9 + $0x134] sm:$0xf]
          %v2168 = vld [vmem:[#allocation9 + $0x138] sm:$0xf]
          %v2169 = vld [vmem:[#allocation9 + $0x13c] sm:$0xf]
          %v2170 = vld [vmem:[#allocation9 + $0x140] sm:$0xf]
          %v2171 = vld [vmem:[#allocation9 + $0x144] sm:$0xf]
          %v2172 = vld [vmem:[#allocation9 + $0x148] sm:$0xf]
          %v2173 = vld [vmem:[#allocation9 + $0x14c] sm:$0xf]
          %v2174 = vld [vmem:[#allocation9 + $0x150] sm:$0xf]
          %v2175 = vld [vmem:[#allocation9 + $0x154] sm:$0xf]
          %v2176 = vld [vmem:[#allocation9 + $0x158] sm:$0xf]
          %v2177 = vld [vmem:[#allocation9 + $0x15c] sm:$0xf]
          %v2178 = vld [vmem:[#allocation9 + $0x160] sm:$0xf]
          %v2179 = vld [vmem:[#allocation9 + $0x164] sm:$0xf]
          %v2180 = vld [vmem:[#allocation9 + $0x168] sm:$0xf]
          %v2181 = vld [vmem:[#allocation9 + $0x16c] sm:$0xf]
          %v2182 = vld [vmem:[#allocation9 + $0x170] sm:$0xf]
          %v2183 = vld [vmem:[#allocation9 + $0x174] sm:$0xf]
          %v2184 = vld [vmem:[#allocation9 + $0x178] sm:$0xf]
          %v2185 = vld [vmem:[#allocation9 + $0x17c] sm:$0xf]
          %v2282 = vunpack.c.l.b16 %v2090
          %v2283 = vunpack.c.l.b16 %v2091
          %v2284 = vunpack.c.l.b16 %v2092
          %v2285 = vunpack.c.l.b16 %v2093
          %v2286 = vunpack.c.l.b16 %v2094
          %v2287 = vunpack.c.l.b16 %v2095
          %v2288 = vunpack.c.l.b16 %v2096
          %v2289 = vunpack.c.l.b16 %v2097
          %v2290 = vunpack.c.l.b16 %v2098
          %v2291 = vunpack.c.l.b16 %v2099
          %v2292 = vunpack.c.l.b16 %v2100
          %v2293 = vunpack.c.l.b16 %v2101
          %v2294 = vunpack.c.l.b16 %v2102
          %v2295 = vunpack.c.l.b16 %v2103
          %v2296 = vunpack.c.l.b16 %v2104
          %v2297 = vunpack.c.l.b16 %v2105
          %v2298 = vunpack.c.l.b16 %v2106
          %v2299 = vunpack.c.l.b16 %v2107
          %v2300 = vunpack.c.l.b16 %v2108
          %v2301 = vunpack.c.l.b16 %v2109
          %v2302 = vunpack.c.l.b16 %v2110
          %v2303 = vunpack.c.l.b16 %v2111
          %v2304 = vunpack.c.l.b16 %v2112
          %v2305 = vunpack.c.l.b16 %v2113
          %v2306 = vunpack.c.l.b16 %v2114
          %v2307 = vunpack.c.l.b16 %v2115
          %v2308 = vunpack.c.l.b16 %v2116
          %v2309 = vunpack.c.l.b16 %v2117
          %v2310 = vunpack.c.l.b16 %v2118
          %v2311 = vunpack.c.l.b16 %v2119
          %v2312 = vunpack.c.l.b16 %v2120
          %v2313 = vunpack.c.l.b16 %v2121
          %v2314 = vunpack.c.l.b16 %v2122
          %v2315 = vunpack.c.l.b16 %v2123
          %v2316 = vunpack.c.l.b16 %v2124
          %v2317 = vunpack.c.l.b16 %v2125
          %v2318 = vunpack.c.l.b16 %v2126
          %v2319 = vunpack.c.l.b16 %v2127
          %v2320 = vunpack.c.l.b16 %v2128
          %v2321 = vunpack.c.l.b16 %v2129
          %v2322 = vunpack.c.l.b16 %v2130
          %v2323 = vunpack.c.l.b16 %v2131
          %v2324 = vunpack.c.l.b16 %v2132
          %v2325 = vunpack.c.l.b16 %v2133
          %v2326 = vunpack.c.l.b16 %v2134
          %v2327 = vunpack.c.l.b16 %v2135
          %v2328 = vunpack.c.l.b16 %v2136
          %v2329 = vunpack.c.l.b16 %v2137
          %v2330 = vunpack.c.l.b16 %v2138
          %v2331 = vunpack.c.l.b16 %v2139
          %v2332 = vunpack.c.l.b16 %v2140
          %v2333 = vunpack.c.l.b16 %v2141
          %v2334 = vunpack.c.l.b16 %v2142
          %v2335 = vunpack.c.l.b16 %v2143
          %v2336 = vunpack.c.l.b16 %v2144
          %v2337 = vunpack.c.l.b16 %v2145
          %v2338 = vunpack.c.l.b16 %v2146
          %v2339 = vunpack.c.l.b16 %v2147
          %v2340 = vunpack.c.l.b16 %v2148
          %v2341 = vunpack.c.l.b16 %v2149
          %v2342 = vunpack.c.l.b16 %v2150
          %v2343 = vunpack.c.l.b16 %v2151
          %v2344 = vunpack.c.l.b16 %v2152
          %v2345 = vunpack.c.l.b16 %v2153
          %v2346 = vunpack.c.l.b16 %v2154
          %v2347 = vunpack.c.l.b16 %v2155
          %v2348 = vunpack.c.l.b16 %v2156
          %v2349 = vunpack.c.l.b16 %v2157
          %v2350 = vunpack.c.l.b16 %v2158
          %v2351 = vunpack.c.l.b16 %v2159
          %v2352 = vunpack.c.l.b16 %v2160
          %v2353 = vunpack.c.l.b16 %v2161
          %v2354 = vunpack.c.l.b16 %v2162
          %v2355 = vunpack.c.l.b16 %v2163
          %v2356 = vunpack.c.l.b16 %v2164
          %v2357 = vunpack.c.l.b16 %v2165
          %v2358 = vunpack.c.l.b16 %v2166
          %v2359 = vunpack.c.l.b16 %v2167
          %v2360 = vunpack.c.l.b16 %v2168
          %v2361 = vunpack.c.l.b16 %v2169
          %v2362 = vunpack.c.l.b16 %v2170
          %v2363 = vunpack.c.l.b16 %v2171
          %v2364 = vunpack.c.l.b16 %v2172
          %v2365 = vunpack.c.l.b16 %v2173
          %v2366 = vunpack.c.l.b16 %v2174
          %v2367 = vunpack.c.l.b16 %v2175
          %v2368 = vunpack.c.l.b16 %v2176
          %v2369 = vunpack.c.l.b16 %v2177
          %v2370 = vunpack.c.l.b16 %v2178
          %v2371 = vunpack.c.l.b16 %v2179
          %v2372 = vunpack.c.l.b16 %v2180
          %v2373 = vunpack.c.l.b16 %v2181
          %v2374 = vunpack.c.l.b16 %v2182
          %v2375 = vunpack.c.l.b16 %v2183
          %v2376 = vunpack.c.l.b16 %v2184
          %v2377 = vunpack.c.l.b16 %v2185
          %v2378 = vpack.c.b16 %v2283, %v2282
          %v2379 = vpack.c.b16 %v2285, %v2284
          %v2380 = vpack.c.b16 %v2287, %v2286
          %v2381 = vpack.c.b16 %v2289, %v2288
          %v2382 = vpack.c.b16 %v2291, %v2290
          %v2383 = vpack.c.b16 %v2293, %v2292
          %v2384 = vpack.c.b16 %v2295, %v2294
          %v2385 = vpack.c.b16 %v2297, %v2296
          %v2386 = vpack.c.b16 %v2299, %v2298
          %v2387 = vpack.c.b16 %v2301, %v2300
          %v2388 = vpack.c.b16 %v2303, %v2302
          %v2389 = vpack.c.b16 %v2305, %v2304
          %v2390 = vpack.c.b16 %v2307, %v2306
          %v2391 = vpack.c.b16 %v2309, %v2308
          %v2392 = vpack.c.b16 %v2311, %v2310
          %v2393 = vpack.c.b16 %v2313, %v2312
          %v2394 = vpack.c.b16 %v2315, %v2314
          %v2395 = vpack.c.b16 %v2317, %v2316
          %v2396 = vpack.c.b16 %v2319, %v2318
          %v2397 = vpack.c.b16 %v2321, %v2320
          %v2398 = vpack.c.b16 %v2323, %v2322
          %v2399 = vpack.c.b16 %v2325, %v2324
          %v2400 = vpack.c.b16 %v2327, %v2326
          %v2401 = vpack.c.b16 %v2329, %v2328
          %v2402 = vpack.c.b16 %v2331, %v2330
          %v2403 = vpack.c.b16 %v2333, %v2332
          %v2404 = vpack.c.b16 %v2335, %v2334
          %v2405 = vpack.c.b16 %v2337, %v2336
          %v2406 = vpack.c.b16 %v2339, %v2338
          %v2407 = vpack.c.b16 %v2341, %v2340
          %v2408 = vpack.c.b16 %v2343, %v2342
          %v2409 = vpack.c.b16 %v2345, %v2344
          %v2410 = vpack.c.b16 %v2347, %v2346
          %v2411 = vpack.c.b16 %v2349, %v2348
          %v2412 = vpack.c.b16 %v2351, %v2350
          %v2413 = vpack.c.b16 %v2353, %v2352
          %v2414 = vpack.c.b16 %v2355, %v2354
          %v2415 = vpack.c.b16 %v2357, %v2356
          %v2416 = vpack.c.b16 %v2359, %v2358
          %v2417 = vpack.c.b16 %v2361, %v2360
          %v2418 = vpack.c.b16 %v2363, %v2362
          %v2419 = vpack.c.b16 %v2365, %v2364
          %v2420 = vpack.c.b16 %v2367, %v2366
          %v2421 = vpack.c.b16 %v2369, %v2368
          %v2422 = vpack.c.b16 %v2371, %v2370
          %v2423 = vpack.c.b16 %v2373, %v2372
          %v2424 = vpack.c.b16 %v2375, %v2374
          %v2425 = vpack.c.b16 %v2377, %v2376
          %2474 = vmatprep.subr.bf16.mxu0 0
          %2475 = vmatpush1.bf16.msra.mxu0 %v2378
          %2476 = vmatprep.subr.bf16.mxu0 0
          %2477 = vmatpush1.bf16.msra.mxu0 %v2379
          %2478 = vmatprep.subr.bf16.mxu0 0
          %2479 = vmatpush1.bf16.msra.mxu0 %v2380
          %2480 = vmatprep.subr.bf16.mxu0 0
          %2481 = vmatpush1.bf16.msra.mxu0 %v2381
          %2482 = vmatprep.subr.bf16.mxu0 0
          %2483 = vmatpush1.bf16.msra.mxu0 %v2382
          %2484 = vmatprep.subr.bf16.mxu0 0
          %2485 = vmatpush1.bf16.msra.mxu0 %v2383
          %2486 = vmatprep.subr.bf16.mxu0 0
          %2487 = vmatpush1.bf16.msra.mxu0 %v2384
          %2488 = vmatprep.subr.bf16.mxu0 0
          %2489 = vmatpush1.bf16.msra.mxu0 %v2385
          %2490 = vmatprep.subr.bf16.mxu0 0
          %2491 = vmatpush1.bf16.msra.mxu0 %v2386
          %2492 = vmatprep.subr.bf16.mxu0 0
          %2493 = vmatpush1.bf16.msra.mxu0 %v2387
          %2494 = vmatprep.subr.bf16.mxu0 0
          %2495 = vmatpush1.bf16.msra.mxu0 %v2388
          %2496 = vmatprep.subr.bf16.mxu0 0
          %2497 = vmatpush1.bf16.msra.mxu0 %v2389
          %2498 = vmatprep.subr.bf16.mxu0 0
          %2499 = vmatpush1.bf16.msra.mxu0 %v2390
          %2500 = vmatprep.subr.bf16.mxu0 0
          %2501 = vmatpush1.bf16.msra.mxu0 %v2391
          %2502 = vmatprep.subr.bf16.mxu0 0
          %2503 = vmatpush1.bf16.msra.mxu0 %v2392
          %2504 = vmatprep.subr.bf16.mxu0 0
          %2505 = vmatpush1.bf16.msra.mxu0 %v2393
          %2506 = vmatprep.mubr.bf16.mxu0 %v2085
          %2507 = vmatmul.mubr.bf16.gmra.mrb[0].mxu0 %v2084
          %v2508 = vpop.f32.mrb[0].mxu0
          %v2509 = vadd.f32 0.0, %v2508
          %v2510 = vpop.f32.mrb[0].mxu0
          %v2511 = vpop.f32.mrb[0].mxu0
          %v2512 = vpop.f32.mrb[0].mxu0
          %2513 = vdwg.mxu0
          %2514 = vmatprep.subr.bf16.mxu0 0
          %2515 = vmatpush1.bf16.msra.mxu0 %v2394
          %2516 = vmatprep.subr.bf16.mxu0 0
          %2517 = vmatpush1.bf16.msra.mxu0 %v2395
          %2518 = vmatprep.subr.bf16.mxu0 0
          %2519 = vmatpush1.bf16.msra.mxu0 %v2396
          %2520 = vmatprep.subr.bf16.mxu0 0
          %2521 = vmatpush1.bf16.msra.mxu0 %v2397
          %2522 = vmatprep.subr.bf16.mxu0 0
          %2523 = vmatpush1.bf16.msra.mxu0 %v2398
          %2524 = vmatprep.subr.bf16.mxu0 0
          %2525 = vmatpush1.bf16.msra.mxu0 %v2399
          %2526 = vmatprep.subr.bf16.mxu0 0
          %2527 = vmatpush1.bf16.msra.mxu0 %v2400
          %2528 = vmatprep.subr.bf16.mxu0 0
          %2529 = vmatpush1.bf16.msra.mxu0 %v2401
          %2530 = vmatprep.subr.bf16.mxu0 0
          %2531 = vmatpush1.bf16.msra.mxu0 %v2402
          %2532 = vmatprep.subr.bf16.mxu0 0
          %2533 = vmatpush1.bf16.msra.mxu0 %v2403
          %2534 = vmatprep.subr.bf16.mxu0 0
          %2535 = vmatpush1.bf16.msra.mxu0 %v2404
          %2536 = vmatprep.subr.bf16.mxu0 0
          %2537 = vmatpush1.bf16.msra.mxu0 %v2405
          %2538 = vmatprep.subr.bf16.mxu0 0
          %2539 = vmatpush1.bf16.msra.mxu0 %v2406
          %2540 = vmatprep.subr.bf16.mxu0 0
          %2541 = vmatpush1.bf16.msra.mxu0 %v2407
          %2542 = vmatprep.subr.bf16.mxu0 0
          %2543 = vmatpush1.bf16.msra.mxu0 %v2408
          %2544 = vmatprep.subr.bf16.mxu0 0
          %2545 = vmatpush1.bf16.msra.mxu0 %v2409
          %2546 = vmatprep.mubr.bf16.mxu0 %v2087
          %2547 = vmatmul.mubr.bf16.gmra.mrb[0].mxu0 %v2086
          %v2548 = vpop.f32.mrb[0].mxu0
          %v2549 = vadd.f32 %v2509, %v2548
          %v2550 = vpop.f32.mrb[0].mxu0
          %v2551 = vpop.f32.mrb[0].mxu0
          %v2552 = vpop.f32.mrb[0].mxu0
          %2553 = vdwg.mxu0
          %2554 = vmatprep.subr.bf16.mxu0 0
          %2555 = vmatpush1.bf16.msra.mxu0 %v2410
          %2556 = vmatprep.subr.bf16.mxu0 0
          %2557 = vmatpush1.bf16.msra.mxu0 %v2411
          %2558 = vmatprep.subr.bf16.mxu0 0
          %2559 = vmatpush1.bf16.msra.mxu0 %v2412
          %2560 = vmatprep.subr.bf16.mxu0 0
          %2561 = vmatpush1.bf16.msra.mxu0 %v2413
          %2562 = vmatprep.subr.bf16.mxu0 0
          %2563 = vmatpush1.bf16.msra.mxu0 %v2414
          %2564 = vmatprep.subr.bf16.mxu0 0
          %2565 = vmatpush1.bf16.msra.mxu0 %v2415
          %2566 = vmatprep.subr.bf16.mxu0 0
          %2567 = vmatpush1.bf16.msra.mxu0 %v2416
          %2568 = vmatprep.subr.bf16.mxu0 0
          %2569 = vmatpush1.bf16.msra.mxu0 %v2417
          %2570 = vmatprep.subr.bf16.mxu0 0
          %2571 = vmatpush1.bf16.msra.mxu0 %v2418
          %2572 = vmatprep.subr.bf16.mxu0 0
          %2573 = vmatpush1.bf16.msra.mxu0 %v2419
          %2574 = vmatprep.subr.bf16.mxu0 0
          %2575 = vmatpush1.bf16.msra.mxu0 %v2420
          %2576 = vmatprep.subr.bf16.mxu0 0
          %2577 = vmatpush1.bf16.msra.mxu0 %v2421
          %2578 = vmatprep.subr.bf16.mxu0 0
          %2579 = vmatpush1.bf16.msra.mxu0 %v2422
          %2580 = vmatprep.subr.bf16.mxu0 0
          %2581 = vmatpush1.bf16.msra.mxu0 %v2423
          %2582 = vmatprep.subr.bf16.mxu0 0
          %2583 = vmatpush1.bf16.msra.mxu0 %v2424
          %2584 = vmatprep.subr.bf16.mxu0 0
          %2585 = vmatpush1.bf16.msra.mxu0 %v2425
          %2586 = vmatprep.mubr.bf16.mxu0 %v2089
          %2587 = vmatmul.mubr.bf16.gmra.mrb[0].mxu0 %v2088
          %v2588 = vpop.f32.mrb[0].mxu0
          %v2589 = vadd.f32 %v2549, %v2588
          %v2590 = vpop.f32.mrb[0].mxu0
          %v2591 = vpop.f32.mrb[0].mxu0
          %v2592 = vpop.f32.mrb[0].mxu0
          %2593 = vdwg.mxu0
          %2594 = vst [vmem:[#allocation12] sm:$0xff] %v2589
        $region60: #{tpu_custom_call.1} parent=35 // pred_fallthru
          _
        // Predicated region
        $region61: #{tpu_custom_call.1} parent=35 // pred_check
          %p2595 = pneg %p133
        $region62: #{tpu_custom_call.1} parent=35 // pred_check_branch
          %2597 = sbr.rel (%p2595) target = $region64
        $region63: #{tpu_custom_call.1} parent=35 // pred_region
          %s2599 = ssub.s32 768, 768
          %2600 = vsyncadd [#allocation5], %s2599
          %s2602 = sshll.u32 [#allocation11], 4
          %s2603 = int_to_ptr.vmem [resolvable:$true] %s2602
          %2605 = dma.vmem_to_hbm [thread:$0]  %s2603, 768, %s4, [#allocation5]
        $region64: #{tpu_custom_call.1} parent=35 // pred_fallthru
          _
        // Predicated region
        $region65: #{tpu_custom_call.1} parent=35 // pred_check
          %p2606 = pneg %p154
        $region66: #{tpu_custom_call.1} parent=35 // pred_check_branch
          %2608 = sbr.rel (%p2606) target = $region68
        $region67: #{tpu_custom_call.1} parent=35 // pred_region
          %s2610 = ssub.s32 128, 128
          %2611 = vsyncadd [#allocation13], %s2610
          %s2613 = sshll.u32 [#allocation12], 4
          %s2614 = int_to_ptr.vmem [resolvable:$true] %s2613
          %2616 = dma.vmem_to_hbm [thread:$0]  %s2614, 128, %s5, [#allocation13]
        $region68: #{tpu_custom_call.1} parent=35 // pred_fallthru
          _
        // Predicated region
        $region69: #{tpu_custom_call.1} parent=35 // pred_check
          %p2617 = pneg %p133
        $region70: #{tpu_custom_call.1} parent=35 // pred_check_branch
          %2619 = sbr.rel (%p2617) target = $region72
        $region71: #{tpu_custom_call.1} parent=35 // pred_region
          %2620 = dma.done [#allocation5], 768
        $region72: #{tpu_custom_call.1} parent=35 // pred_fallthru
          _
        // Predicated region
        $region73: #{tpu_custom_call.1} parent=35 // pred_check
          %p2621 = pneg %p154
        $region74: #{tpu_custom_call.1} parent=35 // pred_check_branch
          %2623 = sbr.rel (%p2621) target = $region76
        $region75: #{tpu_custom_call.1} parent=35 // pred_region
          %2624 = dma.done [#allocation13], 128
        $region76: #{tpu_custom_call.1} parent=35 // pred_fallthru
          _
      $region36: #{tpu_custom_call.1} parent=5 // pred_fallthru
        _
      %p2625 = scmp.le.s32.totalorder 2, %s21
      // Predicated region
      $region77: #{tpu_custom_call.1} parent=5 // pred_check
        %p2626 = pneg %p2625
      $region78: #{tpu_custom_call.1} parent=5 // pred_check_branch
        %2628 = sbr.rel (%p2626) target = $region80
      $region79: #{tpu_custom_call.1} parent=5 // pred_region
        %s2629 = ssub.s32 %s21, 2
      $region80: #{tpu_custom_call.1} parent=5 // pred_fallthru
        _
    $region6: #{tpu_custom_call.1} parent=1 // loop_footer
      %s25 = sadd.s32 1, %s21
    $region7: #{tpu_custom_call.1} parent=1 // loop_footer_branch
      %20 = sbr.rel target = $region3
    $region8: #{tpu_custom_call.1} parent=1 // loop_exit
      _
    %2630 = vsyncpa [#allocation4], 1
    %s2631 = scalar_lea.sflag [#allocation4], 1
    %2632 = vsyncpa %s2631, 1
    %2633 = vsyncpa [#allocation7], 1
    %s2634 = scalar_lea.sflag [#allocation7], 1
    %2635 = vsyncpa %s2634, 1
    %2636 = vsyncpa [#allocation10], 1
    %2637 = vsyncpa [#allocation5], 1
    %s2638 = scalar_lea.sflag [#allocation5], 1
    %2639 = vsyncpa %s2638, 1
    %2640 = vsyncpa [#allocation13], 1

</llo_original>
